<compile_context>
chip_gen: v7x
topology: tpu7x:2x2x1
jax: 0.10.0
libtpu: 0.0.40
codegen_flags: <defaults>
</compile_context>

<pallas_src>
import jax
import jax.numpy as jnp
from jax.experimental import pallas as pl
from jax.experimental.pallas import tpu as pltpu


# ----------------------------------------------------------------------------
# Fused kernel: one image per grid step.
#   xp_ref : (1, 2, H, W/2, C1)  column-parity-split input (even cols, odd cols)
#   w_ref  : (9*C1, C2)          conv weights, (kh, kw, ci) row order, BN-scale folded
#   b_ref  : (1, C2)             folded BN bias
#   o_ref  : (1, H/2, W/2, C2)   output (NHWC)
# ----------------------------------------------------------------------------
def _aconv_kernel(xp_ref, w_ref, b_ref, o_ref):
    _, _, h, hw, c1 = xp_ref.shape
    c2 = w_ref.shape[1]
    hout = h // 2          # conv output rows
    wout = hw              # conv output cols (= W // 2)

    xe = xp_ref[0, 0]      # (h, hw, c1): x[:, 0::2, :]
    xo = xp_ref[0, 1]      # (h, hw, c1): x[:, 1::2, :]

    # ---- avg_pool2d(k=2, s=1, p=0), split by pooled-column parity ----------
    s = xe + xo                                   # x[:, 2c] + x[:, 2c+1]
    p_even = 0.25 * (s[:-1] + s[1:])              # (h-1, hw,   c1): pooled cols 0,2,..
    u = xo[:, : hw - 1, :] + xe[:, 1:hw, :]       # x[:, 2c+1] + x[:, 2c+2]
    p_odd = 0.25 * (u[:-1] + u[1:])               # (h-1, hw-1, c1): pooled cols 1,3,..

    # ---- column planes for the 3 horizontal conv taps (conv pad = 1) -------
    zc = jnp.zeros((h - 1, 1, c1), p_even.dtype)
    col_planes = (
        jnp.concatenate([zc, p_odd], axis=1),     # kw=0 -> pooled col 2*oj - 1
        p_even,                                   # kw=1 -> pooled col 2*oj
        jnp.concatenate([p_odd, zc], axis=1),     # kw=2 -> pooled col 2*oj + 1
    )

    # ---- row pad (=1) + stride-2 row access via a leading-dim reshape ------
    zr_lo = jnp.zeros((1, wout, c1), p_even.dtype)
    zr_hi = jnp.zeros((2, wout, c1), p_even.dtype)
    row_split = []
    for kw in range(3):
        rp = jnp.concatenate([zr_lo, col_planes[kw], zr_hi], axis=0)  # (h+2, wout, c1)
        row_split.append(rp.reshape(hout + 1, 2, wout, c1))           # [a, b] = row 2a+b

    # slabs[kh*3+kw][oi, oj, ci] = padded_pooled[2*oi + kh, 2*oj + kw, ci]
    row_sel = ((0, 0), (0, 1), (1, 0))            # (start, parity) for kh = 0, 1, 2
    slabs = []
    for kh in range(3):
        a0, b = row_sel[kh]
        for kw in range(3):
            slabs.append(row_split[kw][a0:a0 + hout, b])              # (hout, wout, c1)

    # ---- 3x3 conv (BN scale already folded into w) + bias + SiLU -----------
    w = w_ref[...]                                 # (9*c1, c2)
    acc = jnp.zeros((hout, wout, c2), jnp.float32)
    for t in range(9):
        slab = slabs[t]
        for ci in range(c1):
            r = t * c1 + ci
            acc = acc + slab[:, :, ci:ci + 1] * w[r:r + 1, :]
    y = acc + b_ref[...]                           # folded BN bias
    y = y * jax.nn.sigmoid(y)                      # SiLU
    o_ref[0] = y.astype(o_ref.dtype)


# ----------------------------------------------------------------------------
# Wrapper: layout plumbing + BN folding + pallas_call.
# ----------------------------------------------------------------------------
def aconv_pallas(x_nhwc, w_oihw, bn, eps=1e-5):
    n, h, w, c1 = x_nhwc.shape
    c2 = w_oihw.shape[0]
    assert h % 2 == 0 and w % 2 == 0, "AConv demo assumes even spatial dims"
    hout, wout = h // 2, w // 2

    # Column-parity split (wrapper-side layout plumbing, input-sized traffic):
    # xp[n, d, i, c, :] = x[n, i, 2c + d, :]
    xp = x_nhwc.reshape(n, h, w // 2, 2, c1).transpose(0, 3, 1, 2, 4)

    # Fold BN scale into the weight columns; keep a per-channel bias only.
    gamma, beta, mean, var = bn
    scale = gamma / jnp.sqrt(var + eps)
    w_mat = jnp.transpose(w_oihw, (2, 3, 1, 0)).reshape(9 * c1, c2) * scale[None, :]
    bias = (beta - mean * scale).reshape(1, c2)

    return pl.pallas_call(
        _aconv_kernel,
        grid=(n,),
        in_specs=[
            pl.BlockSpec((1, 2, h, w // 2, c1), lambda i: (i, 0, 0, 0, 0)),
            pl.BlockSpec((9 * c1, c2), lambda i: (0, 0)),
            pl.BlockSpec((1, c2), lambda i: (0, 0)),
        ],
        out_specs=pl.BlockSpec((1, hout, wout, c2), lambda i: (i, 0, 0, 0)),
        out_shape=jax.ShapeDtypeStruct((n, hout, wout, c2), x_nhwc.dtype),
        compiler_params=pltpu.CompilerParams(
            dimension_semantics=("parallel",)),
    )(xp, w_mat, bias)


# ----------------------------------------------------------------------------
# Pure-JAX reference (independent path) for correctness checking.
# ----------------------------------------------------------------------------
def aconv_ref(x_nhwc, w_oihw, bn, eps=1e-5):
    p = jax.lax.reduce_window(x_nhwc, 0.0, jax.lax.add,
                              (1, 2, 2, 1), (1, 1, 1, 1), "VALID") * 0.25
    w_hwio = jnp.transpose(w_oihw, (2, 3, 1, 0))
    y = jax.lax.conv_general_dilated(
        p, w_hwio, window_strides=(2, 2), padding=((1, 1), (1, 1)),
        dimension_numbers=("NHWC", "HWIO", "NHWC"),
        precision=jax.lax.Precision.HIGHEST)
    gamma, beta, mean, var = bn
    scale = gamma / jnp.sqrt(var + eps)
    y = y * scale + (beta - mean * scale)
    return y * jax.nn.sigmoid(y)


# ----------------------------------------------------------------------------
if __name__ == "__main__":
    key = jax.random.PRNGKey(0)
    kx, kw, kg, kb, km, kv = jax.random.split(key, 6)

    # torch NCHW (2, 4, 16, 16)  ->  NHWC here; AConv(c1=4, c2=8)
    n, c1, hh, ww = 2, 4, 16, 16
    c2 = 8
    x = jax.random.normal(kx, (n, hh, ww, c1), jnp.float32)
    w_oihw = 0.2 * jax.random.normal(kw, (c2, c1, 3, 3), jnp.float32)
    bn = (jax.random.uniform(kg, (c2,), jnp.float32, 0.5, 1.5),   # gamma
          0.1 * jax.random.normal(kb, (c2,), jnp.float32),        # beta
          0.1 * jax.random.normal(km, (c2,), jnp.float32),        # running mean
          jax.random.uniform(kv, (c2,), jnp.float32, 0.5, 1.5))   # running var

    out = jax.block_until_ready(aconv_pallas(x, w_oihw, bn))
    assert out.shape == (n, hh // 2, ww // 2, c2), out.shape

    ref = jax.block_until_ready(aconv_ref(x, w_oihw, bn))
    max_err = float(jnp.max(jnp.abs(out - ref)))
    assert jnp.allclose(out, ref, rtol=1e-4, atol=1e-4), max_err

    print("KERNEL_OK")
</pallas_src>

<mosaic_0001>
module attributes {stable_mosaic.version = 11 : i64} {
  func.func @_aconv_kernel(%arg0: i32, %arg1: memref<1x2x16x8x4xf32, #tpu.memory_space<vmem>>, %arg2: memref<36x8xf32, #tpu.memory_space<vmem>>, %arg3: memref<1x8xf32, #tpu.memory_space<vmem>>, %arg4: memref<1x8x8x8xf32, #tpu.memory_space<vmem>>) attributes {dimension_semantics = [#tpu.dimension_semantics<parallel>], iteration_bounds = array<i64: 2>, scalar_prefetch = 0 : i64, scratch_operands = 0 : i64, tpu.core_type = #tpu.core_type<tc>, window_params = [{transform_indices = @transform_0, window_bounds = array<i64: 1, 2, 16, 8, 4>}, {pipeline_mode = #tpu.pipeline_mode<synchronous>, transform_indices = @transform_1, window_bounds = array<i64: 36, 8>}, {pipeline_mode = #tpu.pipeline_mode<synchronous>, transform_indices = @transform_2, window_bounds = array<i64: 1, 8>}, {transform_indices = @transform_3, window_bounds = array<i64: 1, 8, 8, 8>}]} {
    %c0 = arith.constant 0 : index
    %c0_0 = arith.constant 0 : index
    %c0_1 = arith.constant 0 : index
    %c0_2 = arith.constant 0 : index
    %c0_3 = arith.constant 0 : index
    %0 = vector.load %arg1[%c0, %c0_0, %c0_1, %c0_2, %c0_3] : memref<1x2x16x8x4xf32, #tpu.memory_space<vmem>>, vector<1x1x16x8x4xf32>
    %1 = vector.shape_cast %0 : vector<1x1x16x8x4xf32> to vector<16x8x4xf32>
    %c0_4 = arith.constant 0 : index
    %c1 = arith.constant 1 : index
    %c0_5 = arith.constant 0 : index
    %c0_6 = arith.constant 0 : index
    %c0_7 = arith.constant 0 : index
    %2 = vector.load %arg1[%c0_4, %c1, %c0_5, %c0_6, %c0_7] : memref<1x2x16x8x4xf32, #tpu.memory_space<vmem>>, vector<1x1x16x8x4xf32>
    %3 = vector.shape_cast %2 : vector<1x1x16x8x4xf32> to vector<16x8x4xf32>
    %4 = arith.addf %1, %3 : vector<16x8x4xf32>
    %5 = vector.extract_strided_slice %4 {offsets = [0, 0, 0], sizes = [15, 8, 4], strides = [1, 1, 1]} : vector<16x8x4xf32> to vector<15x8x4xf32>
    %6 = vector.extract_strided_slice %4 {offsets = [1, 0, 0], sizes = [15, 8, 4], strides = [1, 1, 1]} : vector<16x8x4xf32> to vector<15x8x4xf32>
    %7 = arith.addf %5, %6 : vector<15x8x4xf32>
    %cst = arith.constant 2.500000e-01 : f32
    %8 = vector.broadcast %cst : f32 to vector<15x8x4xf32>
    %9 = arith.mulf %8, %7 : vector<15x8x4xf32>
    %10 = vector.extract_strided_slice %3 {offsets = [0, 0, 0], sizes = [16, 7, 4], strides = [1, 1, 1]} : vector<16x8x4xf32> to vector<16x7x4xf32>
    %11 = vector.extract_strided_slice %1 {offsets = [0, 1, 0], sizes = [16, 7, 4], strides = [1, 1, 1]} : vector<16x8x4xf32> to vector<16x7x4xf32>
    %12 = arith.addf %10, %11 : vector<16x7x4xf32>
    %13 = vector.extract_strided_slice %12 {offsets = [0, 0, 0], sizes = [15, 7, 4], strides = [1, 1, 1]} : vector<16x7x4xf32> to vector<15x7x4xf32>
    %14 = vector.extract_strided_slice %12 {offsets = [1, 0, 0], sizes = [15, 7, 4], strides = [1, 1, 1]} : vector<16x7x4xf32> to vector<15x7x4xf32>
    %15 = arith.addf %13, %14 : vector<15x7x4xf32>
    %cst_8 = arith.constant 2.500000e-01 : f32
    %16 = vector.broadcast %cst_8 : f32 to vector<15x7x4xf32>
    %17 = arith.mulf %16, %15 : vector<15x7x4xf32>
    %cst_9 = arith.constant 0.000000e+00 : f32
    %18 = vector.broadcast %cst_9 : f32 to vector<15x1x4xf32>
    %19 = tpu.concatenate %18, %17 in 1 : vector<15x1x4xf32>, vector<15x7x4xf32> -> vector<15x8x4xf32>
    %20 = tpu.concatenate %17, %18 in 1 : vector<15x7x4xf32>, vector<15x1x4xf32> -> vector<15x8x4xf32>
    %cst_10 = arith.constant 0.000000e+00 : f32
    %21 = vector.broadcast %cst_10 : f32 to vector<1x8x4xf32>
    %cst_11 = arith.constant 0.000000e+00 : f32
    %22 = vector.broadcast %cst_11 : f32 to vector<2x8x4xf32>
    %23 = tpu.concatenate %21, %19, %22 in 0 : vector<1x8x4xf32>, vector<15x8x4xf32>, vector<2x8x4xf32> -> vector<18x8x4xf32>
    %24 = vector.shape_cast %23 : vector<18x8x4xf32> to vector<9x2x8x4xf32>
    %25 = tpu.concatenate %21, %9, %22 in 0 : vector<1x8x4xf32>, vector<15x8x4xf32>, vector<2x8x4xf32> -> vector<18x8x4xf32>
    %26 = vector.shape_cast %25 : vector<18x8x4xf32> to vector<9x2x8x4xf32>
    %27 = tpu.concatenate %21, %20, %22 in 0 : vector<1x8x4xf32>, vector<15x8x4xf32>, vector<2x8x4xf32> -> vector<18x8x4xf32>
    %28 = vector.shape_cast %27 : vector<18x8x4xf32> to vector<9x2x8x4xf32>
    %29 = vector.extract_strided_slice %24 {offsets = [0, 0, 0, 0], sizes = [8, 1, 8, 4], strides = [1, 1, 1, 1]} : vector<9x2x8x4xf32> to vector<8x1x8x4xf32>
    %30 = vector.shape_cast %29 : vector<8x1x8x4xf32> to vector<8x8x4xf32>
    %31 = vector.extract_strided_slice %26 {offsets = [0, 0, 0, 0], sizes = [8, 1, 8, 4], strides = [1, 1, 1, 1]} : vector<9x2x8x4xf32> to vector<8x1x8x4xf32>
    %32 = vector.shape_cast %31 : vector<8x1x8x4xf32> to vector<8x8x4xf32>
    %33 = vector.extract_strided_slice %28 {offsets = [0, 0, 0, 0], sizes = [8, 1, 8, 4], strides = [1, 1, 1, 1]} : vector<9x2x8x4xf32> to vector<8x1x8x4xf32>
    %34 = vector.shape_cast %33 : vector<8x1x8x4xf32> to vector<8x8x4xf32>
    %35 = vector.extract_strided_slice %24 {offsets = [0, 1, 0, 0], sizes = [8, 1, 8, 4], strides = [1, 1, 1, 1]} : vector<9x2x8x4xf32> to vector<8x1x8x4xf32>
    %36 = vector.shape_cast %35 : vector<8x1x8x4xf32> to vector<8x8x4xf32>
    %37 = vector.extract_strided_slice %26 {offsets = [0, 1, 0, 0], sizes = [8, 1, 8, 4], strides = [1, 1, 1, 1]} : vector<9x2x8x4xf32> to vector<8x1x8x4xf32>
    %38 = vector.shape_cast %37 : vector<8x1x8x4xf32> to vector<8x8x4xf32>
    %39 = vector.extract_strided_slice %28 {offsets = [0, 1, 0, 0], sizes = [8, 1, 8, 4], strides = [1, 1, 1, 1]} : vector<9x2x8x4xf32> to vector<8x1x8x4xf32>
    %40 = vector.shape_cast %39 : vector<8x1x8x4xf32> to vector<8x8x4xf32>
    %41 = vector.extract_strided_slice %24 {offsets = [1, 0, 0, 0], sizes = [8, 1, 8, 4], strides = [1, 1, 1, 1]} : vector<9x2x8x4xf32> to vector<8x1x8x4xf32>
    %42 = vector.shape_cast %41 : vector<8x1x8x4xf32> to vector<8x8x4xf32>
    %43 = vector.extract_strided_slice %26 {offsets = [1, 0, 0, 0], sizes = [8, 1, 8, 4], strides = [1, 1, 1, 1]} : vector<9x2x8x4xf32> to vector<8x1x8x4xf32>
    %44 = vector.shape_cast %43 : vector<8x1x8x4xf32> to vector<8x8x4xf32>
    %45 = vector.extract_strided_slice %28 {offsets = [1, 0, 0, 0], sizes = [8, 1, 8, 4], strides = [1, 1, 1, 1]} : vector<9x2x8x4xf32> to vector<8x1x8x4xf32>
    %46 = vector.shape_cast %45 : vector<8x1x8x4xf32> to vector<8x8x4xf32>
    %c0_12 = arith.constant 0 : index
    %c0_13 = arith.constant 0 : index
    %47 = vector.load %arg2[%c0_12, %c0_13] : memref<36x8xf32, #tpu.memory_space<vmem>>, vector<36x8xf32>
    %cst_14 = arith.constant 0.000000e+00 : f32
    %48 = vector.broadcast %cst_14 : f32 to vector<8x8x8xf32>
    %49 = vector.extract_strided_slice %30 {offsets = [0, 0, 0], sizes = [8, 8, 1], strides = [1, 1, 1]} : vector<8x8x4xf32> to vector<8x8x1xf32>
    %50 = vector.extract_strided_slice %47 {offsets = [0, 0], sizes = [1, 8], strides = [1, 1]} : vector<36x8xf32> to vector<1x8xf32>
    %51 = vector.shape_cast %50 : vector<1x8xf32> to vector<1x1x8xf32>
    %52 = vector.broadcast %49 : vector<8x8x1xf32> to vector<8x8x8xf32>
    %53 = vector.broadcast %51 : vector<1x1x8xf32> to vector<8x8x8xf32>
    %54 = arith.mulf %52, %53 : vector<8x8x8xf32>
    %55 = arith.addf %48, %54 : vector<8x8x8xf32>
    %56 = vector.extract_strided_slice %30 {offsets = [0, 0, 1], sizes = [8, 8, 1], strides = [1, 1, 1]} : vector<8x8x4xf32> to vector<8x8x1xf32>
    %57 = vector.extract_strided_slice %47 {offsets = [1, 0], sizes = [1, 8], strides = [1, 1]} : vector<36x8xf32> to vector<1x8xf32>
    %58 = vector.shape_cast %57 : vector<1x8xf32> to vector<1x1x8xf32>
    %59 = vector.broadcast %56 : vector<8x8x1xf32> to vector<8x8x8xf32>
    %60 = vector.broadcast %58 : vector<1x1x8xf32> to vector<8x8x8xf32>
    %61 = arith.mulf %59, %60 : vector<8x8x8xf32>
    %62 = arith.addf %55, %61 : vector<8x8x8xf32>
    %63 = vector.extract_strided_slice %30 {offsets = [0, 0, 2], sizes = [8, 8, 1], strides = [1, 1, 1]} : vector<8x8x4xf32> to vector<8x8x1xf32>
    %64 = vector.extract_strided_slice %47 {offsets = [2, 0], sizes = [1, 8], strides = [1, 1]} : vector<36x8xf32> to vector<1x8xf32>
    %65 = vector.shape_cast %64 : vector<1x8xf32> to vector<1x1x8xf32>
    %66 = vector.broadcast %63 : vector<8x8x1xf32> to vector<8x8x8xf32>
    %67 = vector.broadcast %65 : vector<1x1x8xf32> to vector<8x8x8xf32>
    %68 = arith.mulf %66, %67 : vector<8x8x8xf32>
    %69 = arith.addf %62, %68 : vector<8x8x8xf32>
    %70 = vector.extract_strided_slice %30 {offsets = [0, 0, 3], sizes = [8, 8, 1], strides = [1, 1, 1]} : vector<8x8x4xf32> to vector<8x8x1xf32>
    %71 = vector.extract_strided_slice %47 {offsets = [3, 0], sizes = [1, 8], strides = [1, 1]} : vector<36x8xf32> to vector<1x8xf32>
    %72 = vector.shape_cast %71 : vector<1x8xf32> to vector<1x1x8xf32>
    %73 = vector.broadcast %70 : vector<8x8x1xf32> to vector<8x8x8xf32>
    %74 = vector.broadcast %72 : vector<1x1x8xf32> to vector<8x8x8xf32>
    %75 = arith.mulf %73, %74 : vector<8x8x8xf32>
    %76 = arith.addf %69, %75 : vector<8x8x8xf32>
    %77 = vector.extract_strided_slice %32 {offsets = [0, 0, 0], sizes = [8, 8, 1], strides = [1, 1, 1]} : vector<8x8x4xf32> to vector<8x8x1xf32>
    %78 = vector.extract_strided_slice %47 {offsets = [4, 0], sizes = [1, 8], strides = [1, 1]} : vector<36x8xf32> to vector<1x8xf32>
    %79 = vector.shape_cast %78 : vector<1x8xf32> to vector<1x1x8xf32>
    %80 = vector.broadcast %77 : vector<8x8x1xf32> to vector<8x8x8xf32>
    %81 = vector.broadcast %79 : vector<1x1x8xf32> to vector<8x8x8xf32>
    %82 = arith.mulf %80, %81 : vector<8x8x8xf32>
    %83 = arith.addf %76, %82 : vector<8x8x8xf32>
    %84 = vector.extract_strided_slice %32 {offsets = [0, 0, 1], sizes = [8, 8, 1], strides = [1, 1, 1]} : vector<8x8x4xf32> to vector<8x8x1xf32>
    %85 = vector.extract_strided_slice %47 {offsets = [5, 0], sizes = [1, 8], strides = [1, 1]} : vector<36x8xf32> to vector<1x8xf32>
    %86 = vector.shape_cast %85 : vector<1x8xf32> to vector<1x1x8xf32>
    %87 = vector.broadcast %84 : vector<8x8x1xf32> to vector<8x8x8xf32>
    %88 = vector.broadcast %86 : vector<1x1x8xf32> to vector<8x8x8xf32>
    %89 = arith.mulf %87, %88 : vector<8x8x8xf32>
    %90 = arith.addf %83, %89 : vector<8x8x8xf32>
    %91 = vector.extract_strided_slice %32 {offsets = [0, 0, 2], sizes = [8, 8, 1], strides = [1, 1, 1]} : vector<8x8x4xf32> to vector<8x8x1xf32>
    %92 = vector.extract_strided_slice %47 {offsets = [6, 0], sizes = [1, 8], strides = [1, 1]} : vector<36x8xf32> to vector<1x8xf32>
    %93 = vector.shape_cast %92 : vector<1x8xf32> to vector<1x1x8xf32>
    %94 = vector.broadcast %91 : vector<8x8x1xf32> to vector<8x8x8xf32>
    %95 = vector.broadcast %93 : vector<1x1x8xf32> to vector<8x8x8xf32>
    %96 = arith.mulf %94, %95 : vector<8x8x8xf32>
    %97 = arith.addf %90, %96 : vector<8x8x8xf32>
    %98 = vector.extract_strided_slice %32 {offsets = [0, 0, 3], sizes = [8, 8, 1], strides = [1, 1, 1]} : vector<8x8x4xf32> to vector<8x8x1xf32>
    %99 = vector.extract_strided_slice %47 {offsets = [7, 0], sizes = [1, 8], strides = [1, 1]} : vector<36x8xf32> to vector<1x8xf32>
    %100 = vector.shape_cast %99 : vector<1x8xf32> to vector<1x1x8xf32>
    %101 = vector.broadcast %98 : vector<8x8x1xf32> to vector<8x8x8xf32>
    %102 = vector.broadcast %100 : vector<1x1x8xf32> to vector<8x8x8xf32>
    %103 = arith.mulf %101, %102 : vector<8x8x8xf32>
    %104 = arith.addf %97, %103 : vector<8x8x8xf32>
    %105 = vector.extract_strided_slice %34 {offsets = [0, 0, 0], sizes = [8, 8, 1], strides = [1, 1, 1]} : vector<8x8x4xf32> to vector<8x8x1xf32>
    %106 = vector.extract_strided_slice %47 {offsets = [8, 0], sizes = [1, 8], strides = [1, 1]} : vector<36x8xf32> to vector<1x8xf32>
    %107 = vector.shape_cast %106 : vector<1x8xf32> to vector<1x1x8xf32>
    %108 = vector.broadcast %105 : vector<8x8x1xf32> to vector<8x8x8xf32>
    %109 = vector.broadcast %107 : vector<1x1x8xf32> to vector<8x8x8xf32>
    %110 = arith.mulf %108, %109 : vector<8x8x8xf32>
    %111 = arith.addf %104, %110 : vector<8x8x8xf32>
    %112 = vector.extract_strided_slice %34 {offsets = [0, 0, 1], sizes = [8, 8, 1], strides = [1, 1, 1]} : vector<8x8x4xf32> to vector<8x8x1xf32>
    %113 = vector.extract_strided_slice %47 {offsets = [9, 0], sizes = [1, 8], strides = [1, 1]} : vector<36x8xf32> to vector<1x8xf32>
    %114 = vector.shape_cast %113 : vector<1x8xf32> to vector<1x1x8xf32>
    %115 = vector.broadcast %112 : vector<8x8x1xf32> to vector<8x8x8xf32>
    %116 = vector.broadcast %114 : vector<1x1x8xf32> to vector<8x8x8xf32>
    %117 = arith.mulf %115, %116 : vector<8x8x8xf32>
    %118 = arith.addf %111, %117 : vector<8x8x8xf32>
    %119 = vector.extract_strided_slice %34 {offsets = [0, 0, 2], sizes = [8, 8, 1], strides = [1, 1, 1]} : vector<8x8x4xf32> to vector<8x8x1xf32>
    %120 = vector.extract_strided_slice %47 {offsets = [10, 0], sizes = [1, 8], strides = [1, 1]} : vector<36x8xf32> to vector<1x8xf32>
    %121 = vector.shape_cast %120 : vector<1x8xf32> to vector<1x1x8xf32>
    %122 = vector.broadcast %119 : vector<8x8x1xf32> to vector<8x8x8xf32>
    %123 = vector.broadcast %121 : vector<1x1x8xf32> to vector<8x8x8xf32>
    %124 = arith.mulf %122, %123 : vector<8x8x8xf32>
    %125 = arith.addf %118, %124 : vector<8x8x8xf32>
    %126 = vector.extract_strided_slice %34 {offsets = [0, 0, 3], sizes = [8, 8, 1], strides = [1, 1, 1]} : vector<8x8x4xf32> to vector<8x8x1xf32>
    %127 = vector.extract_strided_slice %47 {offsets = [11, 0], sizes = [1, 8], strides = [1, 1]} : vector<36x8xf32> to vector<1x8xf32>
    %128 = vector.shape_cast %127 : vector<1x8xf32> to vector<1x1x8xf32>
    %129 = vector.broadcast %126 : vector<8x8x1xf32> to vector<8x8x8xf32>
    %130 = vector.broadcast %128 : vector<1x1x8xf32> to vector<8x8x8xf32>
    %131 = arith.mulf %129, %130 : vector<8x8x8xf32>
    %132 = arith.addf %125, %131 : vector<8x8x8xf32>
    %133 = vector.extract_strided_slice %36 {offsets = [0, 0, 0], sizes = [8, 8, 1], strides = [1, 1, 1]} : vector<8x8x4xf32> to vector<8x8x1xf32>
    %134 = vector.extract_strided_slice %47 {offsets = [12, 0], sizes = [1, 8], strides = [1, 1]} : vector<36x8xf32> to vector<1x8xf32>
    %135 = vector.shape_cast %134 : vector<1x8xf32> to vector<1x1x8xf32>
    %136 = vector.broadcast %133 : vector<8x8x1xf32> to vector<8x8x8xf32>
    %137 = vector.broadcast %135 : vector<1x1x8xf32> to vector<8x8x8xf32>
    %138 = arith.mulf %136, %137 : vector<8x8x8xf32>
    %139 = arith.addf %132, %138 : vector<8x8x8xf32>
    %140 = vector.extract_strided_slice %36 {offsets = [0, 0, 1], sizes = [8, 8, 1], strides = [1, 1, 1]} : vector<8x8x4xf32> to vector<8x8x1xf32>
    %141 = vector.extract_strided_slice %47 {offsets = [13, 0], sizes = [1, 8], strides = [1, 1]} : vector<36x8xf32> to vector<1x8xf32>
    %142 = vector.shape_cast %141 : vector<1x8xf32> to vector<1x1x8xf32>
    %143 = vector.broadcast %140 : vector<8x8x1xf32> to vector<8x8x8xf32>
    %144 = vector.broadcast %142 : vector<1x1x8xf32> to vector<8x8x8xf32>
    %145 = arith.mulf %143, %144 : vector<8x8x8xf32>
    %146 = arith.addf %139, %145 : vector<8x8x8xf32>
    %147 = vector.extract_strided_slice %36 {offsets = [0, 0, 2], sizes = [8, 8, 1], strides = [1, 1, 1]} : vector<8x8x4xf32> to vector<8x8x1xf32>
    %148 = vector.extract_strided_slice %47 {offsets = [14, 0], sizes = [1, 8], strides = [1, 1]} : vector<36x8xf32> to vector<1x8xf32>
    %149 = vector.shape_cast %148 : vector<1x8xf32> to vector<1x1x8xf32>
    %150 = vector.broadcast %147 : vector<8x8x1xf32> to vector<8x8x8xf32>
    %151 = vector.broadcast %149 : vector<1x1x8xf32> to vector<8x8x8xf32>
    %152 = arith.mulf %150, %151 : vector<8x8x8xf32>
    %153 = arith.addf %146, %152 : vector<8x8x8xf32>
    %154 = vector.extract_strided_slice %36 {offsets = [0, 0, 3], sizes = [8, 8, 1], strides = [1, 1, 1]} : vector<8x8x4xf32> to vector<8x8x1xf32>
    %155 = vector.extract_strided_slice %47 {offsets = [15, 0], sizes = [1, 8], strides = [1, 1]} : vector<36x8xf32> to vector<1x8xf32>
    %156 = vector.shape_cast %155 : vector<1x8xf32> to vector<1x1x8xf32>
    %157 = vector.broadcast %154 : vector<8x8x1xf32> to vector<8x8x8xf32>
    %158 = vector.broadcast %156 : vector<1x1x8xf32> to vector<8x8x8xf32>
    %159 = arith.mulf %157, %158 : vector<8x8x8xf32>
    %160 = arith.addf %153, %159 : vector<8x8x8xf32>
    %161 = vector.extract_strided_slice %38 {offsets = [0, 0, 0], sizes = [8, 8, 1], strides = [1, 1, 1]} : vector<8x8x4xf32> to vector<8x8x1xf32>
    %162 = vector.extract_strided_slice %47 {offsets = [16, 0], sizes = [1, 8], strides = [1, 1]} : vector<36x8xf32> to vector<1x8xf32>
    %163 = vector.shape_cast %162 : vector<1x8xf32> to vector<1x1x8xf32>
    %164 = vector.broadcast %161 : vector<8x8x1xf32> to vector<8x8x8xf32>
    %165 = vector.broadcast %163 : vector<1x1x8xf32> to vector<8x8x8xf32>
    %166 = arith.mulf %164, %165 : vector<8x8x8xf32>
    %167 = arith.addf %160, %166 : vector<8x8x8xf32>
    %168 = vector.extract_strided_slice %38 {offsets = [0, 0, 1], sizes = [8, 8, 1], strides = [1, 1, 1]} : vector<8x8x4xf32> to vector<8x8x1xf32>
    %169 = vector.extract_strided_slice %47 {offsets = [17, 0], sizes = [1, 8], strides = [1, 1]} : vector<36x8xf32> to vector<1x8xf32>
    %170 = vector.shape_cast %169 : vector<1x8xf32> to vector<1x1x8xf32>
    %171 = vector.broadcast %168 : vector<8x8x1xf32> to vector<8x8x8xf32>
    %172 = vector.broadcast %170 : vector<1x1x8xf32> to vector<8x8x8xf32>
    %173 = arith.mulf %171, %172 : vector<8x8x8xf32>
    %174 = arith.addf %167, %173 : vector<8x8x8xf32>
    %175 = vector.extract_strided_slice %38 {offsets = [0, 0, 2], sizes = [8, 8, 1], strides = [1, 1, 1]} : vector<8x8x4xf32> to vector<8x8x1xf32>
    %176 = vector.extract_strided_slice %47 {offsets = [18, 0], sizes = [1, 8], strides = [1, 1]} : vector<36x8xf32> to vector<1x8xf32>
    %177 = vector.shape_cast %176 : vector<1x8xf32> to vector<1x1x8xf32>
    %178 = vector.broadcast %175 : vector<8x8x1xf32> to vector<8x8x8xf32>
    %179 = vector.broadcast %177 : vector<1x1x8xf32> to vector<8x8x8xf32>
    %180 = arith.mulf %178, %179 : vector<8x8x8xf32>
    %181 = arith.addf %174, %180 : vector<8x8x8xf32>
    %182 = vector.extract_strided_slice %38 {offsets = [0, 0, 3], sizes = [8, 8, 1], strides = [1, 1, 1]} : vector<8x8x4xf32> to vector<8x8x1xf32>
    %183 = vector.extract_strided_slice %47 {offsets = [19, 0], sizes = [1, 8], strides = [1, 1]} : vector<36x8xf32> to vector<1x8xf32>
    %184 = vector.shape_cast %183 : vector<1x8xf32> to vector<1x1x8xf32>
    %185 = vector.broadcast %182 : vector<8x8x1xf32> to vector<8x8x8xf32>
    %186 = vector.broadcast %184 : vector<1x1x8xf32> to vector<8x8x8xf32>
    %187 = arith.mulf %185, %186 : vector<8x8x8xf32>
    %188 = arith.addf %181, %187 : vector<8x8x8xf32>
    %189 = vector.extract_strided_slice %40 {offsets = [0, 0, 0], sizes = [8, 8, 1], strides = [1, 1, 1]} : vector<8x8x4xf32> to vector<8x8x1xf32>
    %190 = vector.extract_strided_slice %47 {offsets = [20, 0], sizes = [1, 8], strides = [1, 1]} : vector<36x8xf32> to vector<1x8xf32>
    %191 = vector.shape_cast %190 : vector<1x8xf32> to vector<1x1x8xf32>
    %192 = vector.broadcast %189 : vector<8x8x1xf32> to vector<8x8x8xf32>
    %193 = vector.broadcast %191 : vector<1x1x8xf32> to vector<8x8x8xf32>
    %194 = arith.mulf %192, %193 : vector<8x8x8xf32>
    %195 = arith.addf %188, %194 : vector<8x8x8xf32>
    %196 = vector.extract_strided_slice %40 {offsets = [0, 0, 1], sizes = [8, 8, 1], strides = [1, 1, 1]} : vector<8x8x4xf32> to vector<8x8x1xf32>
    %197 = vector.extract_strided_slice %47 {offsets = [21, 0], sizes = [1, 8], strides = [1, 1]} : vector<36x8xf32> to vector<1x8xf32>
    %198 = vector.shape_cast %197 : vector<1x8xf32> to vector<1x1x8xf32>
    %199 = vector.broadcast %196 : vector<8x8x1xf32> to vector<8x8x8xf32>
    %200 = vector.broadcast %198 : vector<1x1x8xf32> to vector<8x8x8xf32>
    %201 = arith.mulf %199, %200 : vector<8x8x8xf32>
    %202 = arith.addf %195, %201 : vector<8x8x8xf32>
    %203 = vector.extract_strided_slice %40 {offsets = [0, 0, 2], sizes = [8, 8, 1], strides = [1, 1, 1]} : vector<8x8x4xf32> to vector<8x8x1xf32>
    %204 = vector.extract_strided_slice %47 {offsets = [22, 0], sizes = [1, 8], strides = [1, 1]} : vector<36x8xf32> to vector<1x8xf32>
    %205 = vector.shape_cast %204 : vector<1x8xf32> to vector<1x1x8xf32>
    %206 = vector.broadcast %203 : vector<8x8x1xf32> to vector<8x8x8xf32>
    %207 = vector.broadcast %205 : vector<1x1x8xf32> to vector<8x8x8xf32>
    %208 = arith.mulf %206, %207 : vector<8x8x8xf32>
    %209 = arith.addf %202, %208 : vector<8x8x8xf32>
    %210 = vector.extract_strided_slice %40 {offsets = [0, 0, 3], sizes = [8, 8, 1], strides = [1, 1, 1]} : vector<8x8x4xf32> to vector<8x8x1xf32>
    %211 = vector.extract_strided_slice %47 {offsets = [23, 0], sizes = [1, 8], strides = [1, 1]} : vector<36x8xf32> to vector<1x8xf32>
    %212 = vector.shape_cast %211 : vector<1x8xf32> to vector<1x1x8xf32>
    %213 = vector.broadcast %210 : vector<8x8x1xf32> to vector<8x8x8xf32>
    %214 = vector.broadcast %212 : vector<1x1x8xf32> to vector<8x8x8xf32>
    %215 = arith.mulf %213, %214 : vector<8x8x8xf32>
    %216 = arith.addf %209, %215 : vector<8x8x8xf32>
    %217 = vector.extract_strided_slice %42 {offsets = [0, 0, 0], sizes = [8, 8, 1], strides = [1, 1, 1]} : vector<8x8x4xf32> to vector<8x8x1xf32>
    %218 = vector.extract_strided_slice %47 {offsets = [24, 0], sizes = [1, 8], strides = [1, 1]} : vector<36x8xf32> to vector<1x8xf32>
    %219 = vector.shape_cast %218 : vector<1x8xf32> to vector<1x1x8xf32>
    %220 = vector.broadcast %217 : vector<8x8x1xf32> to vector<8x8x8xf32>
    %221 = vector.broadcast %219 : vector<1x1x8xf32> to vector<8x8x8xf32>
    %222 = arith.mulf %220, %221 : vector<8x8x8xf32>
    %223 = arith.addf %216, %222 : vector<8x8x8xf32>
    %224 = vector.extract_strided_slice %42 {offsets = [0, 0, 1], sizes = [8, 8, 1], strides = [1, 1, 1]} : vector<8x8x4xf32> to vector<8x8x1xf32>
    %225 = vector.extract_strided_slice %47 {offsets = [25, 0], sizes = [1, 8], strides = [1, 1]} : vector<36x8xf32> to vector<1x8xf32>
    %226 = vector.shape_cast %225 : vector<1x8xf32> to vector<1x1x8xf32>
    %227 = vector.broadcast %224 : vector<8x8x1xf32> to vector<8x8x8xf32>
    %228 = vector.broadcast %226 : vector<1x1x8xf32> to vector<8x8x8xf32>
    %229 = arith.mulf %227, %228 : vector<8x8x8xf32>
    %230 = arith.addf %223, %229 : vector<8x8x8xf32>
    %231 = vector.extract_strided_slice %42 {offsets = [0, 0, 2], sizes = [8, 8, 1], strides = [1, 1, 1]} : vector<8x8x4xf32> to vector<8x8x1xf32>
    %232 = vector.extract_strided_slice %47 {offsets = [26, 0], sizes = [1, 8], strides = [1, 1]} : vector<36x8xf32> to vector<1x8xf32>
    %233 = vector.shape_cast %232 : vector<1x8xf32> to vector<1x1x8xf32>
    %234 = vector.broadcast %231 : vector<8x8x1xf32> to vector<8x8x8xf32>
    %235 = vector.broadcast %233 : vector<1x1x8xf32> to vector<8x8x8xf32>
    %236 = arith.mulf %234, %235 : vector<8x8x8xf32>
    %237 = arith.addf %230, %236 : vector<8x8x8xf32>
    %238 = vector.extract_strided_slice %42 {offsets = [0, 0, 3], sizes = [8, 8, 1], strides = [1, 1, 1]} : vector<8x8x4xf32> to vector<8x8x1xf32>
    %239 = vector.extract_strided_slice %47 {offsets = [27, 0], sizes = [1, 8], strides = [1, 1]} : vector<36x8xf32> to vector<1x8xf32>
    %240 = vector.shape_cast %239 : vector<1x8xf32> to vector<1x1x8xf32>
    %241 = vector.broadcast %238 : vector<8x8x1xf32> to vector<8x8x8xf32>
    %242 = vector.broadcast %240 : vector<1x1x8xf32> to vector<8x8x8xf32>
    %243 = arith.mulf %241, %242 : vector<8x8x8xf32>
    %244 = arith.addf %237, %243 : vector<8x8x8xf32>
    %245 = vector.extract_strided_slice %44 {offsets = [0, 0, 0], sizes = [8, 8, 1], strides = [1, 1, 1]} : vector<8x8x4xf32> to vector<8x8x1xf32>
    %246 = vector.extract_strided_slice %47 {offsets = [28, 0], sizes = [1, 8], strides = [1, 1]} : vector<36x8xf32> to vector<1x8xf32>
    %247 = vector.shape_cast %246 : vector<1x8xf32> to vector<1x1x8xf32>
    %248 = vector.broadcast %245 : vector<8x8x1xf32> to vector<8x8x8xf32>
    %249 = vector.broadcast %247 : vector<1x1x8xf32> to vector<8x8x8xf32>
    %250 = arith.mulf %248, %249 : vector<8x8x8xf32>
    %251 = arith.addf %244, %250 : vector<8x8x8xf32>
    %252 = vector.extract_strided_slice %44 {offsets = [0, 0, 1], sizes = [8, 8, 1], strides = [1, 1, 1]} : vector<8x8x4xf32> to vector<8x8x1xf32>
    %253 = vector.extract_strided_slice %47 {offsets = [29, 0], sizes = [1, 8], strides = [1, 1]} : vector<36x8xf32> to vector<1x8xf32>
    %254 = vector.shape_cast %253 : vector<1x8xf32> to vector<1x1x8xf32>
    %255 = vector.broadcast %252 : vector<8x8x1xf32> to vector<8x8x8xf32>
    %256 = vector.broadcast %254 : vector<1x1x8xf32> to vector<8x8x8xf32>
    %257 = arith.mulf %255, %256 : vector<8x8x8xf32>
    %258 = arith.addf %251, %257 : vector<8x8x8xf32>
    %259 = vector.extract_strided_slice %44 {offsets = [0, 0, 2], sizes = [8, 8, 1], strides = [1, 1, 1]} : vector<8x8x4xf32> to vector<8x8x1xf32>
    %260 = vector.extract_strided_slice %47 {offsets = [30, 0], sizes = [1, 8], strides = [1, 1]} : vector<36x8xf32> to vector<1x8xf32>
    %261 = vector.shape_cast %260 : vector<1x8xf32> to vector<1x1x8xf32>
    %262 = vector.broadcast %259 : vector<8x8x1xf32> to vector<8x8x8xf32>
    %263 = vector.broadcast %261 : vector<1x1x8xf32> to vector<8x8x8xf32>
    %264 = arith.mulf %262, %263 : vector<8x8x8xf32>
    %265 = arith.addf %258, %264 : vector<8x8x8xf32>
    %266 = vector.extract_strided_slice %44 {offsets = [0, 0, 3], sizes = [8, 8, 1], strides = [1, 1, 1]} : vector<8x8x4xf32> to vector<8x8x1xf32>
    %267 = vector.extract_strided_slice %47 {offsets = [31, 0], sizes = [1, 8], strides = [1, 1]} : vector<36x8xf32> to vector<1x8xf32>
    %268 = vector.shape_cast %267 : vector<1x8xf32> to vector<1x1x8xf32>
    %269 = vector.broadcast %266 : vector<8x8x1xf32> to vector<8x8x8xf32>
    %270 = vector.broadcast %268 : vector<1x1x8xf32> to vector<8x8x8xf32>
    %271 = arith.mulf %269, %270 : vector<8x8x8xf32>
    %272 = arith.addf %265, %271 : vector<8x8x8xf32>
    %273 = vector.extract_strided_slice %46 {offsets = [0, 0, 0], sizes = [8, 8, 1], strides = [1, 1, 1]} : vector<8x8x4xf32> to vector<8x8x1xf32>
    %274 = vector.extract_strided_slice %47 {offsets = [32, 0], sizes = [1, 8], strides = [1, 1]} : vector<36x8xf32> to vector<1x8xf32>
    %275 = vector.shape_cast %274 : vector<1x8xf32> to vector<1x1x8xf32>
    %276 = vector.broadcast %273 : vector<8x8x1xf32> to vector<8x8x8xf32>
    %277 = vector.broadcast %275 : vector<1x1x8xf32> to vector<8x8x8xf32>
    %278 = arith.mulf %276, %277 : vector<8x8x8xf32>
    %279 = arith.addf %272, %278 : vector<8x8x8xf32>
    %280 = vector.extract_strided_slice %46 {offsets = [0, 0, 1], sizes = [8, 8, 1], strides = [1, 1, 1]} : vector<8x8x4xf32> to vector<8x8x1xf32>
    %281 = vector.extract_strided_slice %47 {offsets = [33, 0], sizes = [1, 8], strides = [1, 1]} : vector<36x8xf32> to vector<1x8xf32>
    %282 = vector.shape_cast %281 : vector<1x8xf32> to vector<1x1x8xf32>
    %283 = vector.broadcast %280 : vector<8x8x1xf32> to vector<8x8x8xf32>
    %284 = vector.broadcast %282 : vector<1x1x8xf32> to vector<8x8x8xf32>
    %285 = arith.mulf %283, %284 : vector<8x8x8xf32>
    %286 = arith.addf %279, %285 : vector<8x8x8xf32>
    %287 = vector.extract_strided_slice %46 {offsets = [0, 0, 2], sizes = [8, 8, 1], strides = [1, 1, 1]} : vector<8x8x4xf32> to vector<8x8x1xf32>
    %288 = vector.extract_strided_slice %47 {offsets = [34, 0], sizes = [1, 8], strides = [1, 1]} : vector<36x8xf32> to vector<1x8xf32>
    %289 = vector.shape_cast %288 : vector<1x8xf32> to vector<1x1x8xf32>
    %290 = vector.broadcast %287 : vector<8x8x1xf32> to vector<8x8x8xf32>
    %291 = vector.broadcast %289 : vector<1x1x8xf32> to vector<8x8x8xf32>
    %292 = arith.mulf %290, %291 : vector<8x8x8xf32>
    %293 = arith.addf %286, %292 : vector<8x8x8xf32>
    %294 = vector.extract_strided_slice %46 {offsets = [0, 0, 3], sizes = [8, 8, 1], strides = [1, 1, 1]} : vector<8x8x4xf32> to vector<8x8x1xf32>
    %295 = vector.extract_strided_slice %47 {offsets = [35, 0], sizes = [1, 8], strides = [1, 1]} : vector<36x8xf32> to vector<1x8xf32>
    %296 = vector.shape_cast %295 : vector<1x8xf32> to vector<1x1x8xf32>
    %297 = vector.broadcast %294 : vector<8x8x1xf32> to vector<8x8x8xf32>
    %298 = vector.broadcast %296 : vector<1x1x8xf32> to vector<8x8x8xf32>
    %299 = arith.mulf %297, %298 : vector<8x8x8xf32>
    %300 = arith.addf %293, %299 : vector<8x8x8xf32>
    %c0_15 = arith.constant 0 : index
    %c0_16 = arith.constant 0 : index
    %301 = vector.load %arg3[%c0_15, %c0_16] : memref<1x8xf32, #tpu.memory_space<vmem>>, vector<1x8xf32>
    %302 = vector.shape_cast %301 : vector<1x8xf32> to vector<1x1x8xf32>
    %303 = vector.broadcast %302 : vector<1x1x8xf32> to vector<8x8x8xf32>
    %304 = arith.addf %300, %303 : vector<8x8x8xf32>
    %305 = arith.negf %304 : vector<8x8x8xf32>
    %306 = math.exp %305 : vector<8x8x8xf32>
    %cst_17 = arith.constant 1.000000e+00 : f32
    %307 = vector.broadcast %cst_17 : f32 to vector<8x8x8xf32>
    %308 = arith.addf %307, %306 : vector<8x8x8xf32>
    %309 = arith.divf %307, %308 : vector<8x8x8xf32>
    %310 = arith.mulf %304, %309 : vector<8x8x8xf32>
    %c0_18 = arith.constant 0 : index
    %c0_19 = arith.constant 0 : index
    %c0_20 = arith.constant 0 : index
    %c0_21 = arith.constant 0 : index
    %311 = vector.load %arg4[%c0_18, %c0_19, %c0_20, %c0_21] : memref<1x8x8x8xf32, #tpu.memory_space<vmem>>, vector<1x8x8x8xf32>
    %312 = vector.shape_cast %311 : vector<1x8x8x8xf32> to vector<8x8x8xf32>
    %313 = vector.shape_cast %310 : vector<8x8x8xf32> to vector<1x8x8x8xf32>
    tpu.vector_store %arg4[%c0_18, %c0_19, %c0_20, %c0_21], %313 {strides = array<i32>} : memref<1x8x8x8xf32, #tpu.memory_space<vmem>>, vector<1x8x8x8xf32>,
    return
  }
  func.func @transform_0(%arg0: i32) -> (i32, i32, i32, i32, i32) {
    %c0_i32 = arith.constant 0 : i32
    %c0_i32_0 = arith.constant 0 : i32
    %c0_i32_1 = arith.constant 0 : i32
    %c0_i32_2 = arith.constant 0 : i32
    %c0_i32_3 = arith.constant 0 : i32
    return %arg0, %c0_i32, %c0_i32_0, %c0_i32_1, %c0_i32_2 : i32, i32, i32, i32, i32
  }
  func.func @transform_1(%arg0: i32) -> (i32, i32) {
    %c0_i32 = arith.constant 0 : i32
    %c0_i32_0 = arith.constant 0 : i32
    %c0_i32_1 = arith.constant 0 : i32
    return %c0_i32, %c0_i32_0 : i32, i32
  }
  func.func @transform_2(%arg0: i32) -> (i32, i32) {
    %c0_i32 = arith.constant 0 : i32
    %c0_i32_0 = arith.constant 0 : i32
    %c0_i32_1 = arith.constant 0 : i32
    return %c0_i32, %c0_i32_0 : i32, i32
  }
  func.func @transform_3(%arg0: i32) -> (i32, i32, i32, i32) {
    %c0_i32 = arith.constant 0 : i32
    %c0_i32_0 = arith.constant 0 : i32
    %c0_i32_1 = arith.constant 0 : i32
    %c0_i32_2 = arith.constant 0 : i32
    return %arg0, %c0_i32, %c0_i32_0, %c0_i32_1 : i32, i32, i32, i32
  }
}

</mosaic_0001>

<llo_original>
// kernel: tpu_custom_call.1
$region0: #{tpu_custom_call.1}
  #allocation0 [shape = 'u32[]', space=smem, size = 0x4, offset = 0x4, fixed_abs, tag = 'smem constant byte address 0x4 - core index']
  #allocation1 [shape = 'u32[144,128]{1,0:T(1,128)}', space=vmem, size = 0x12000, scoped, tag = 'internal scratch']
  %s0 = inlined_call_operand.vmem [shape: f32[2,2,16,8,4], index: 0, kind: input, shape index: {}]
  %s1 = inlined_call_operand.vmem [shape: f32[36,8], index: 1, kind: input, shape index: {}]
  %s2 = inlined_call_operand.vmem [shape: f32[1,8], index: 2, kind: input, shape index: {}]
  %s3 = inlined_call_operand.hbm [shape: f32[2,8,8,8], index: 3, kind: output, shape index: {}]
  %s4 = sld [smem:[#allocation0]]
  $region45: #{tpu_custom_call.1} parent=0
    _
  %s6 = ssub.s32 1, %s4
  %s7 = scalar_select 0, %s6, %s4
  $region1: #{tpu_custom_call.1} parent=0
    #allocation2 [shape = 'u8[65536]{0}', space=vmem, size = 0x10000, scoped, tag = 'output window, operand 0']
    #allocation3 [shape = 's32[2]{0}', space=sflag, size = 0x8, scoped, tag = 'scoped memory for tpu_custom_call.1']
    %8 = vsyncpa [#allocation3], 0
    %s9 = scalar_lea.sflag [#allocation3], 1
    %10 = vsyncpa %s9, 0
    loop: start=0, step=1, limit=4
    $region2: #{tpu_custom_call.1} parent=1 // loop_pre_header
      _
    $region3: #{tpu_custom_call.1} parent=1 // loop_header
      %s12 = sphi 0, %s16
      %p13 = scmp.ge.s32.totalorder %s12, 4
      %s22 = sphi 0, %s24
      %s25 = sphi 0, %s22
      %s26 = sphi 0, %s25
      %s42 = sphi 0, %s26
      %s46 = sphi 0, %s46
      %s48 = sphi 0, %s46
      %s49 = sphi 0, %s48
      %s63 = sphi 0, %s49
      %s67 = sphi 0, %s67
      %s69 = sphi 0, %s67
      %s70 = sphi 0, %s69
      %s84 = sphi 0, %s70
      %s90 = sphi 0, %s92
      %s93 = sphi 0, %s90
      %s94 = sphi 0, %s93
      %s110 = sphi 0, %s94
    $region4: #{tpu_custom_call.1} parent=1 // loop_header_branch
      %15 = sbr.rel (%p13) target = $region8
    $region5: #{tpu_custom_call.1} parent=1 // loop_body
      %s17 = ssub.s32 %s12, 1
      %s18 = ssub.s32 %s12, 2
      %s19 = sadd.s32 %s12, 1
      %s20 = ssub.s32 %s12, %s19
      %p21 = scmp.eq.s32.totalorder %s20, 0
      %s23 = sadd.s32 %s22, 1
      %s24 = scalar_select %p21, %s22, %s23
      %p27 = pneg %p21
      %p28 = scmp.eq.s32.totalorder %s12, 1
      %p29 = por %p27, %p28
      %p30 = scmp.ne.s32.totalorder %s22, %s25
      %p31 = scmp.eq.s32.totalorder %s12, 0
      %p32 = por %p30, %p31
      %p33 = scmp.ne.s32.totalorder %s22, %s25
      %p34 = scmp.eq.s32.totalorder %s17, 1
      %p35 = por %p33, %p34
      %p36 = scmp.ne.s32.totalorder %s25, %s26
      %p37 = scmp.eq.s32.totalorder %s17, 0
      %p38 = por %p36, %p37
      %p39 = scmp.ne.s32.totalorder %s25, %s26
      %p40 = scmp.eq.s32.totalorder %s18, 1
      %p41 = por %p39, %p40
      %p43 = scmp.ne.s32.totalorder %s26, %s42
      %p44 = scmp.eq.s32.totalorder %s18, 0
      %p45 = por %p43, %p44
      %s47 = sadd.s32 %s46, 1
      %p50 = scmp.eq.s32.totalorder %s12, 1
      %p51 = scmp.ne.s32.totalorder %s46, %s48
      %p52 = scmp.eq.s32.totalorder %s12, 0
      %p53 = por %p51, %p52
      %p54 = scmp.ne.s32.totalorder %s46, %s48
      %p55 = scmp.eq.s32.totalorder %s17, 1
      %p56 = por %p54, %p55
      %p57 = scmp.ne.s32.totalorder %s48, %s49
      %p58 = scmp.eq.s32.totalorder %s17, 0
      %p59 = por %p57, %p58
      %p60 = scmp.ne.s32.totalorder %s48, %s49
      %p61 = scmp.eq.s32.totalorder %s18, 1
      %p62 = por %p60, %p61
      %p64 = scmp.ne.s32.totalorder %s49, %s63
      %p65 = scmp.eq.s32.totalorder %s18, 0
      %p66 = por %p64, %p65
      %s68 = sadd.s32 %s67, 1
      %p71 = scmp.eq.s32.totalorder %s12, 1
      %p72 = scmp.ne.s32.totalorder %s67, %s69
      %p73 = scmp.eq.s32.totalorder %s12, 0
      %p74 = por %p72, %p73
      %p75 = scmp.ne.s32.totalorder %s67, %s69
      %p76 = scmp.eq.s32.totalorder %s17, 1
      %p77 = por %p75, %p76
      %p78 = scmp.ne.s32.totalorder %s69, %s70
      %p79 = scmp.eq.s32.totalorder %s17, 0
      %p80 = por %p78, %p79
      %p81 = scmp.ne.s32.totalorder %s69, %s70
      %p82 = scmp.eq.s32.totalorder %s18, 1
      %p83 = por %p81, %p82
      %p85 = scmp.ne.s32.totalorder %s70, %s84
      %p86 = scmp.eq.s32.totalorder %s18, 0
      %p87 = por %p85, %p86
      %s88 = ssub.s32 %s12, %s19
      %p89 = scmp.eq.s32.totalorder %s88, 0
      %s91 = sadd.s32 %s90, 1
      %s92 = scalar_select %p89, %s90, %s91
      %p95 = pneg %p89
      %p96 = scmp.eq.s32.totalorder %s12, 1
      %p97 = por %p95, %p96
      %p98 = scmp.ne.s32.totalorder %s90, %s93
      %p99 = scmp.eq.s32.totalorder %s12, 0
      %p100 = por %p98, %p99
      %p101 = scmp.ne.s32.totalorder %s90, %s93
      %p102 = scmp.eq.s32.totalorder %s17, 1
      %p103 = por %p101, %p102
      %p104 = scmp.ne.s32.totalorder %s93, %s94
      %p105 = scmp.eq.s32.totalorder %s17, 0
      %p106 = por %p104, %p105
      %p107 = scmp.ne.s32.totalorder %s93, %s94
      %p108 = scmp.eq.s32.totalorder %s18, 1
      %p109 = por %p107, %p108
      %p111 = scmp.ne.s32.totalorder %s94, %s110
      %p112 = scmp.eq.s32.totalorder %s18, 0
      %p113 = por %p111, %p112
      %p114 = scmp.le.s32.totalorder 1, %s12
      %p115 = scmp.lt.s32.totalorder %s12, 3
      %p116 = pnand %p114, %p115
      %p117 = pneg %p116
      // Predicated region
      $region9: #{tpu_custom_call.1} parent=5 // pred_check
        _
      $region10: #{tpu_custom_call.1} parent=5 // pred_check_branch
        %119 = sbr.rel (%p116) target = $region12
      $region11: #{tpu_custom_call.1} parent=5 // pred_region
        %s120 = ssub.s32 %s12, 1
        // Predicated region
        $region13: #{tpu_custom_call.1} parent=11 // pred_check
          %p121 = pneg %p59
        $region14: #{tpu_custom_call.1} parent=11 // pred_check_branch
          %123 = sbr.rel (%p121) target = $region16
        $region15: #{tpu_custom_call.1} parent=11 // pred_region
          _
        $region16: #{tpu_custom_call.1} parent=11 // pred_fallthru
          _
        // Predicated region
        $region17: #{tpu_custom_call.1} parent=11 // pred_check
          %p124 = pneg %p80
        $region18: #{tpu_custom_call.1} parent=11 // pred_check_branch
          %126 = sbr.rel (%p124) target = $region20
        $region19: #{tpu_custom_call.1} parent=11 // pred_region
          _
        $region20: #{tpu_custom_call.1} parent=11 // pred_fallthru
          _
      $region12: #{tpu_custom_call.1} parent=5 // pred_fallthru
        _
      %p127 = scmp.lt.s32.totalorder %s12, 2
      // Predicated region
      $region21: #{tpu_custom_call.1} parent=5 // pred_check
        %p128 = pneg %p127
      $region22: #{tpu_custom_call.1} parent=5 // pred_check_branch
        %130 = sbr.rel (%p128) target = $region24
      $region23: #{tpu_custom_call.1} parent=5 // pred_region
        // Predicated region
        $region25: #{tpu_custom_call.1} parent=23 // pred_check
          %p131 = pneg %p32
        $region26: #{tpu_custom_call.1} parent=23 // pred_check_branch
          %133 = sbr.rel (%p131) target = $region28
        $region27: #{tpu_custom_call.1} parent=23 // pred_region
          %p134 = scmp.lt.s32.totalorder %s12, 1
          %s135 = scalar_select %p134, %s12, 1
          %s136 = smul.addr %s135, 32
          %s137 = smul.addr %s136, 8
          %s138 = scalar_lea.vmem %s0, %s137
        $region28: #{tpu_custom_call.1} parent=23 // pred_fallthru
          _
      $region24: #{tpu_custom_call.1} parent=5 // pred_fallthru
        _
      %p139 = scmp.le.s32.totalorder 1, %s12
      %p140 = scmp.lt.s32.totalorder %s12, 3
      %p141 = pnand %p139, %p140
      %p142 = pneg %p141
      // Predicated region
      $region29: #{tpu_custom_call.1} parent=5 // pred_check
        _
      $region30: #{tpu_custom_call.1} parent=5 // pred_check_branch
        %144 = sbr.rel (%p141) target = $region32
      $region31: #{tpu_custom_call.1} parent=5 // pred_region
        %s145 = ssub.s32 %s12, 1
        %p146 = scmp.lt.s32.totalorder %s17, 1
        %s147 = scalar_select %p146, %s17, 1
        %s148 = smul.addr %s147, 32
        %s149 = smul.addr %s148, 8
        %s150 = scalar_lea.vmem %s0, %s149
        %p151 = pneg %p38
        %p152 = pneg %p35
        %p153 = pneg %p59
        %p154 = pneg %p56
        %p155 = pneg %p80
        %p156 = pneg %p77
        %p157 = pneg %p106
        %p158 = pneg %p103
        %s159 = sand.u32 %s93, 1
        %s160 = scalar_lea.sflag [#allocation3], %s159
        %s161 = sand.u32 %s93, 1
        %s162 = smul.addr %s161, 64
        %s163 = scalar_lea.vmem [#allocation2], %s162
        %p164 = scmp.lt.s32.totalorder %s17, 1
        %s165 = scalar_select %p164, %s17, 1
        %s166 = smul.addr %s165, 32
        %s167 = smul.addr %s166, 8
        %s168 = scalar_lea.vmem %s0, %s167
        %v169 = vld [vmem:[%s168] sm:$0xff]
        %v170 = vld [vmem:[%s168 + $0x8] sm:$0xff]
        %v171 = vld [vmem:[%s168 + $0x10] sm:$0xff]
        %v172 = vld [vmem:[%s168 + $0x18] sm:$0xff]
        %v173 = vld [vmem:[%s168 + $0x20] sm:$0xff]
        %v174 = vld [vmem:[%s168 + $0x28] sm:$0xff]
        %v175 = vld [vmem:[%s168 + $0x30] sm:$0xff]
        %v176 = vld [vmem:[%s168 + $0x38] sm:$0xff]
        %v177 = vld [vmem:[%s168 + $0x40] sm:$0xff]
        %v178 = vld [vmem:[%s168 + $0x48] sm:$0xff]
        %v179 = vld [vmem:[%s168 + $0x50] sm:$0xff]
        %v180 = vld [vmem:[%s168 + $0x58] sm:$0xff]
        %v181 = vld [vmem:[%s168 + $0x60] sm:$0xff]
        %v182 = vld [vmem:[%s168 + $0x68] sm:$0xff]
        %v183 = vld [vmem:[%s168 + $0x70] sm:$0xff]
        %v184 = vld [vmem:[%s168 + $0x78] sm:$0xff]
        %s185 = scalar_lea.vmem %s168, 128
        %v186 = vld [vmem:[%s185] sm:$0xff]
        %v187 = vld [vmem:[%s185 + $0x8] sm:$0xff]
        %v188 = vld [vmem:[%s185 + $0x10] sm:$0xff]
        %v189 = vld [vmem:[%s185 + $0x18] sm:$0xff]
        %v190 = vld [vmem:[%s185 + $0x20] sm:$0xff]
        %v191 = vld [vmem:[%s185 + $0x28] sm:$0xff]
        %v192 = vld [vmem:[%s185 + $0x30] sm:$0xff]
        %v193 = vld [vmem:[%s185 + $0x38] sm:$0xff]
        %v194 = vld [vmem:[%s185 + $0x40] sm:$0xff]
        %v195 = vld [vmem:[%s185 + $0x48] sm:$0xff]
        %v196 = vld [vmem:[%s185 + $0x50] sm:$0xff]
        %v197 = vld [vmem:[%s185 + $0x58] sm:$0xff]
        %v198 = vld [vmem:[%s185 + $0x60] sm:$0xff]
        %v199 = vld [vmem:[%s185 + $0x68] sm:$0xff]
        %v200 = vld [vmem:[%s185 + $0x70] sm:$0xff]
        %v201 = vld [vmem:[%s185 + $0x78] sm:$0xff]
        %v202 = vadd.f32 %v169, %v186
        %v203 = vadd.f32 %v170, %v187
        %v204 = vadd.f32 %v171, %v188
        %v205 = vadd.f32 %v172, %v189
        %v206 = vadd.f32 %v173, %v190
        %v207 = vadd.f32 %v174, %v191
        %v208 = vadd.f32 %v175, %v192
        %v209 = vadd.f32 %v176, %v193
        %v210 = vadd.f32 %v177, %v194
        %v211 = vadd.f32 %v178, %v195
        %v212 = vadd.f32 %v179, %v196
        %v213 = vadd.f32 %v180, %v197
        %v214 = vadd.f32 %v181, %v198
        %v215 = vadd.f32 %v182, %v199
        %v216 = vadd.f32 %v183, %v200
        %v217 = vadd.f32 %v184, %v201
        %v218 = vadd.f32 %v202, %v203
        %v219 = vadd.f32 %v203, %v204
        %v220 = vadd.f32 %v204, %v205
        %v221 = vadd.f32 %v205, %v206
        %v222 = vadd.f32 %v206, %v207
        %v223 = vadd.f32 %v207, %v208
        %v224 = vadd.f32 %v208, %v209
        %v225 = vadd.f32 %v209, %v210
        %v226 = vadd.f32 %v210, %v211
        %v227 = vadd.f32 %v211, %v212
        %v228 = vadd.f32 %v212, %v213
        %v229 = vadd.f32 %v213, %v214
        %v230 = vadd.f32 %v214, %v215
        %v231 = vadd.f32 %v215, %v216
        %v232 = vadd.f32 %v216, %v217
        %v233 = vmul.f32 %v218, 0.25
        %v234 = vmul.f32 %v219, 0.25
        %v235 = vmul.f32 %v220, 0.25
        %v236 = vmul.f32 %v221, 0.25
        %v237 = vmul.f32 %v222, 0.25
        %v238 = vmul.f32 %v223, 0.25
        %v239 = vmul.f32 %v224, 0.25
        %v240 = vmul.f32 %v225, 0.25
        %v241 = vmul.f32 %v226, 0.25
        %v242 = vmul.f32 %v227, 0.25
        %v243 = vmul.f32 %v228, 0.25
        %v244 = vmul.f32 %v229, 0.25
        %v245 = vmul.f32 %v230, 0.25
        %v246 = vmul.f32 %v231, 0.25
        %v247 = vmul.f32 %v232, 0.25
        %v264 = vrot.slane %v169, 1
        %v265 = vrot.slane %v170, 1
        %v266 = vrot.slane %v171, 1
        %v267 = vrot.slane %v172, 1
        %v268 = vrot.slane %v173, 1
        %v269 = vrot.slane %v174, 1
        %v270 = vrot.slane %v175, 1
        %v271 = vrot.slane %v176, 1
        %v272 = vrot.slane %v177, 1
        %v273 = vrot.slane %v178, 1
        %v274 = vrot.slane %v179, 1
        %v275 = vrot.slane %v180, 1
        %v276 = vrot.slane %v181, 1
        %v277 = vrot.slane %v182, 1
        %v278 = vrot.slane %v183, 1
        %v279 = vrot.slane %v184, 1
        %v296 = vadd.f32 %v186, %v264
        %v297 = vadd.f32 %v187, %v265
        %v298 = vadd.f32 %v188, %v266
        %v299 = vadd.f32 %v189, %v267
        %v300 = vadd.f32 %v190, %v268
        %v301 = vadd.f32 %v191, %v269
        %v302 = vadd.f32 %v192, %v270
        %v303 = vadd.f32 %v193, %v271
        %v304 = vadd.f32 %v194, %v272
        %v305 = vadd.f32 %v195, %v273
        %v306 = vadd.f32 %v196, %v274
        %v307 = vadd.f32 %v197, %v275
        %v308 = vadd.f32 %v198, %v276
        %v309 = vadd.f32 %v199, %v277
        %v310 = vadd.f32 %v200, %v278
        %v311 = vadd.f32 %v201, %v279
        %v312 = vadd.f32 %v296, %v297
        %v313 = vadd.f32 %v297, %v298
        %v314 = vadd.f32 %v298, %v299
        %v315 = vadd.f32 %v299, %v300
        %v316 = vadd.f32 %v300, %v301
        %v317 = vadd.f32 %v301, %v302
        %v318 = vadd.f32 %v302, %v303
        %v319 = vadd.f32 %v303, %v304
        %v320 = vadd.f32 %v304, %v305
        %v321 = vadd.f32 %v305, %v306
        %v322 = vadd.f32 %v306, %v307
        %v323 = vadd.f32 %v307, %v308
        %v324 = vadd.f32 %v308, %v309
        %v325 = vadd.f32 %v309, %v310
        %v326 = vadd.f32 %v310, %v311
        %v327 = vmul.f32 %v312, 0.25
        %v328 = vmul.f32 %v313, 0.25
        %v329 = vmul.f32 %v314, 0.25
        %v330 = vmul.f32 %v315, 0.25
        %v331 = vmul.f32 %v316, 0.25
        %v332 = vmul.f32 %v317, 0.25
        %v333 = vmul.f32 %v318, 0.25
        %v334 = vmul.f32 %v319, 0.25
        %v335 = vmul.f32 %v320, 0.25
        %v336 = vmul.f32 %v321, 0.25
        %v337 = vmul.f32 %v322, 0.25
        %v338 = vmul.f32 %v323, 0.25
        %v339 = vmul.f32 %v324, 0.25
        %v340 = vmul.f32 %v325, 0.25
        %v341 = vmul.f32 %v326, 0.25
        %v357 = vrot.slane %v327, 7
        %v358 = vrot.slane %v328, 7
        %v359 = vrot.slane %v329, 7
        %v360 = vrot.slane %v330, 7
        %v361 = vrot.slane %v331, 7
        %v362 = vrot.slane %v332, 7
        %v363 = vrot.slane %v333, 7
        %v364 = vrot.slane %v334, 7
        %v365 = vrot.slane %v335, 7
        %v366 = vrot.slane %v336, 7
        %v367 = vrot.slane %v337, 7
        %v368 = vrot.slane %v338, 7
        %v369 = vrot.slane %v339, 7
        %v370 = vrot.slane %v340, 7
        %v371 = vrot.slane %v341, 7
        %vm387 = vcmask 1040384
        %v388 = vsel %vm387, 0.0, %v357
        %v389 = vsel %vm387, 0.0, %v358
        %v390 = vsel %vm387, 0.0, %v359
        %v391 = vsel %vm387, 0.0, %v360
        %v392 = vsel %vm387, 0.0, %v361
        %v393 = vsel %vm387, 0.0, %v362
        %v394 = vsel %vm387, 0.0, %v363
        %v395 = vsel %vm387, 0.0, %v364
        %v396 = vsel %vm387, 0.0, %v365
        %v397 = vsel %vm387, 0.0, %v366
        %v398 = vsel %vm387, 0.0, %v367
        %v399 = vsel %vm387, 0.0, %v368
        %v400 = vsel %vm387, 0.0, %v369
        %v401 = vsel %vm387, 0.0, %v370
        %v402 = vsel %vm387, 0.0, %v371
        %vm403 = vcmask 1046528
        %v404 = vsel %vm403, %v327, 0.0
        %v405 = vsel %vm403, %v328, 0.0
        %v406 = vsel %vm403, %v329, 0.0
        %v407 = vsel %vm403, %v330, 0.0
        %v408 = vsel %vm403, %v331, 0.0
        %v409 = vsel %vm403, %v332, 0.0
        %v410 = vsel %vm403, %v333, 0.0
        %v411 = vsel %vm403, %v334, 0.0
        %v412 = vsel %vm403, %v335, 0.0
        %v413 = vsel %vm403, %v336, 0.0
        %v414 = vsel %vm403, %v337, 0.0
        %v415 = vsel %vm403, %v338, 0.0
        %v416 = vsel %vm403, %v339, 0.0
        %v417 = vsel %vm403, %v340, 0.0
        %v418 = vsel %vm403, %v341, 0.0
        %v419 = vld [vmem:[%s1] sm:$0xff]
        %v420 = vld [vmem:[%s1 + $0x8] sm:$0xff]
        %v421 = vld [vmem:[%s1 + $0x10] sm:$0xff]
        %v422 = vld [vmem:[%s1 + $0x18] sm:$0xff]
        %v423 = vld [vmem:[%s1 + $0x20] sm:$0xf]
        %425 = vset.pattern.permute.xlu0 0
        %426 = vperm.xlu0 %425, 0.0
        %v427 = vpop.permute.xlu0 %426
        %430 = vset.pattern.permute.xlu0 0
        %431 = vperm.xlu0 %430, %v389
        %v432 = vpop.permute.xlu0 %431
        %435 = vset.pattern.permute.xlu0 0
        %436 = vperm.xlu0 %435, %v391
        %v437 = vpop.permute.xlu0 %436
        %440 = vset.pattern.permute.xlu0 0
        %441 = vperm.xlu0 %440, %v393
        %v442 = vpop.permute.xlu0 %441
        %445 = vset.pattern.permute.xlu0 0
        %446 = vperm.xlu0 %445, %v395
        %v447 = vpop.permute.xlu0 %446
        %450 = vset.pattern.permute.xlu0 0
        %451 = vperm.xlu0 %450, %v397
        %v452 = vpop.permute.xlu0 %451
        %455 = vset.pattern.permute.xlu0 0
        %456 = vperm.xlu0 %455, %v399
        %v457 = vpop.permute.xlu0 %456
        %460 = vset.pattern.permute.xlu0 0
        %461 = vperm.xlu0 %460, %v401
        %v462 = vpop.permute.xlu0 %461
        %v464 = vlaneseq
        %v465 = vshrl.u32 %v464, 7
        %v466 = vsub.s32 0, %v465
        %v467 = vrot.slane %v419, %v466
        %v468 = vmul.f32 %v427, %v467
        %v469 = vmul.f32 %v432, %v467
        %v470 = vmul.f32 %v437, %v467
        %v471 = vmul.f32 %v442, %v467
        %v472 = vmul.f32 %v447, %v467
        %v473 = vmul.f32 %v452, %v467
        %v474 = vmul.f32 %v457, %v467
        %v475 = vmul.f32 %v462, %v467
        %v476 = vadd.f32 %v468, 0.0
        %v477 = vadd.f32 %v469, 0.0
        %v478 = vadd.f32 %v470, 0.0
        %v479 = vadd.f32 %v471, 0.0
        %v480 = vadd.f32 %v472, 0.0
        %v481 = vadd.f32 %v473, 0.0
        %v482 = vadd.f32 %v474, 0.0
        %v483 = vadd.f32 %v475, 0.0
        %484 = vset.pattern.permute.xlu0 1
        %485 = vperm.xlu0 %484, 0.0
        %v486 = vpop.permute.xlu0 %485
        %488 = vset.pattern.permute.xlu0 1
        %489 = vperm.xlu0 %488, %v389
        %v490 = vpop.permute.xlu0 %489
        %492 = vset.pattern.permute.xlu0 1
        %493 = vperm.xlu0 %492, %v391
        %v494 = vpop.permute.xlu0 %493
        %496 = vset.pattern.permute.xlu0 1
        %497 = vperm.xlu0 %496, %v393
        %v498 = vpop.permute.xlu0 %497
        %500 = vset.pattern.permute.xlu0 1
        %501 = vperm.xlu0 %500, %v395
        %v502 = vpop.permute.xlu0 %501
        %504 = vset.pattern.permute.xlu0 1
        %505 = vperm.xlu0 %504, %v397
        %v506 = vpop.permute.xlu0 %505
        %508 = vset.pattern.permute.xlu0 1
        %509 = vperm.xlu0 %508, %v399
        %v510 = vpop.permute.xlu0 %509
        %512 = vset.pattern.permute.xlu0 1
        %513 = vperm.xlu0 %512, %v401
        %v514 = vpop.permute.xlu0 %513
        %v516 = vlaneseq
        %v517 = vshrl.u32 %v516, 7
        %v518 = vsub.s32 1, %v517
        %v519 = vrot.slane %v419, %v518
        %v520 = vmul.f32 %v486, %v519
        %v521 = vmul.f32 %v490, %v519
        %v522 = vmul.f32 %v494, %v519
        %v523 = vmul.f32 %v498, %v519
        %v524 = vmul.f32 %v502, %v519
        %v525 = vmul.f32 %v506, %v519
        %v526 = vmul.f32 %v510, %v519
        %v527 = vmul.f32 %v514, %v519
        %v528 = vadd.f32 %v476, %v520
        %v529 = vadd.f32 %v477, %v521
        %v530 = vadd.f32 %v478, %v522
        %v531 = vadd.f32 %v479, %v523
        %v532 = vadd.f32 %v480, %v524
        %v533 = vadd.f32 %v481, %v525
        %v534 = vadd.f32 %v482, %v526
        %v535 = vadd.f32 %v483, %v527
        %536 = vset.pattern.permute.xlu0 2
        %537 = vperm.xlu0 %536, 0.0
        %v538 = vpop.permute.xlu0 %537
        %540 = vset.pattern.permute.xlu0 2
        %541 = vperm.xlu0 %540, %v389
        %v542 = vpop.permute.xlu0 %541
        %544 = vset.pattern.permute.xlu0 2
        %545 = vperm.xlu0 %544, %v391
        %v546 = vpop.permute.xlu0 %545
        %548 = vset.pattern.permute.xlu0 2
        %549 = vperm.xlu0 %548, %v393
        %v550 = vpop.permute.xlu0 %549
        %552 = vset.pattern.permute.xlu0 2
        %553 = vperm.xlu0 %552, %v395
        %v554 = vpop.permute.xlu0 %553
        %556 = vset.pattern.permute.xlu0 2
        %557 = vperm.xlu0 %556, %v397
        %v558 = vpop.permute.xlu0 %557
        %560 = vset.pattern.permute.xlu0 2
        %561 = vperm.xlu0 %560, %v399
        %v562 = vpop.permute.xlu0 %561
        %564 = vset.pattern.permute.xlu0 2
        %565 = vperm.xlu0 %564, %v401
        %v566 = vpop.permute.xlu0 %565
        %v568 = vlaneseq
        %v569 = vshrl.u32 %v568, 7
        %v570 = vsub.s32 2, %v569
        %v571 = vrot.slane %v419, %v570
        %v572 = vmul.f32 %v538, %v571
        %v573 = vmul.f32 %v542, %v571
        %v574 = vmul.f32 %v546, %v571
        %v575 = vmul.f32 %v550, %v571
        %v576 = vmul.f32 %v554, %v571
        %v577 = vmul.f32 %v558, %v571
        %v578 = vmul.f32 %v562, %v571
        %v579 = vmul.f32 %v566, %v571
        %v580 = vadd.f32 %v528, %v572
        %v581 = vadd.f32 %v529, %v573
        %v582 = vadd.f32 %v530, %v574
        %v583 = vadd.f32 %v531, %v575
        %v584 = vadd.f32 %v532, %v576
        %v585 = vadd.f32 %v533, %v577
        %v586 = vadd.f32 %v534, %v578
        %v587 = vadd.f32 %v535, %v579
        %588 = vset.pattern.permute.xlu0 3
        %589 = vperm.xlu0 %588, 0.0
        %v590 = vpop.permute.xlu0 %589
        %592 = vset.pattern.permute.xlu0 3
        %593 = vperm.xlu0 %592, %v389
        %v594 = vpop.permute.xlu0 %593
        %596 = vset.pattern.permute.xlu0 3
        %597 = vperm.xlu0 %596, %v391
        %v598 = vpop.permute.xlu0 %597
        %600 = vset.pattern.permute.xlu0 3
        %601 = vperm.xlu0 %600, %v393
        %v602 = vpop.permute.xlu0 %601
        %604 = vset.pattern.permute.xlu0 3
        %605 = vperm.xlu0 %604, %v395
        %v606 = vpop.permute.xlu0 %605
        %608 = vset.pattern.permute.xlu0 3
        %609 = vperm.xlu0 %608, %v397
        %v610 = vpop.permute.xlu0 %609
        %612 = vset.pattern.permute.xlu0 3
        %613 = vperm.xlu0 %612, %v399
        %v614 = vpop.permute.xlu0 %613
        %616 = vset.pattern.permute.xlu0 3
        %617 = vperm.xlu0 %616, %v401
        %v618 = vpop.permute.xlu0 %617
        %v620 = vlaneseq
        %v621 = vshrl.u32 %v620, 7
        %v622 = vsub.s32 3, %v621
        %v623 = vrot.slane %v419, %v622
        %v624 = vmul.f32 %v590, %v623
        %v625 = vmul.f32 %v594, %v623
        %v626 = vmul.f32 %v598, %v623
        %v627 = vmul.f32 %v602, %v623
        %v628 = vmul.f32 %v606, %v623
        %v629 = vmul.f32 %v610, %v623
        %v630 = vmul.f32 %v614, %v623
        %v631 = vmul.f32 %v618, %v623
        %v632 = vadd.f32 %v580, %v624
        %v633 = vadd.f32 %v581, %v625
        %v634 = vadd.f32 %v582, %v626
        %v635 = vadd.f32 %v583, %v627
        %v636 = vadd.f32 %v584, %v628
        %v637 = vadd.f32 %v585, %v629
        %v638 = vadd.f32 %v586, %v630
        %v639 = vadd.f32 %v587, %v631
        %641 = vset.pattern.permute.xlu0 0
        %642 = vperm.xlu0 %641, %v234
        %v643 = vpop.permute.xlu0 %642
        %646 = vset.pattern.permute.xlu0 0
        %647 = vperm.xlu0 %646, %v236
        %v648 = vpop.permute.xlu0 %647
        %651 = vset.pattern.permute.xlu0 0
        %652 = vperm.xlu0 %651, %v238
        %v653 = vpop.permute.xlu0 %652
        %656 = vset.pattern.permute.xlu0 0
        %657 = vperm.xlu0 %656, %v240
        %v658 = vpop.permute.xlu0 %657
        %661 = vset.pattern.permute.xlu0 0
        %662 = vperm.xlu0 %661, %v242
        %v663 = vpop.permute.xlu0 %662
        %666 = vset.pattern.permute.xlu0 0
        %667 = vperm.xlu0 %666, %v244
        %v668 = vpop.permute.xlu0 %667
        %671 = vset.pattern.permute.xlu0 0
        %672 = vperm.xlu0 %671, %v246
        %v673 = vpop.permute.xlu0 %672
        %v675 = vlaneseq
        %v676 = vshrl.u32 %v675, 7
        %v677 = vsub.s32 4, %v676
        %v678 = vrot.slane %v419, %v677
        %v679 = vmul.f32 %v427, %v678
        %v680 = vmul.f32 %v643, %v678
        %v681 = vmul.f32 %v648, %v678
        %v682 = vmul.f32 %v653, %v678
        %v683 = vmul.f32 %v658, %v678
        %v684 = vmul.f32 %v663, %v678
        %v685 = vmul.f32 %v668, %v678
        %v686 = vmul.f32 %v673, %v678
        %v687 = vadd.f32 %v632, %v679
        %v688 = vadd.f32 %v633, %v680
        %v689 = vadd.f32 %v634, %v681
        %v690 = vadd.f32 %v635, %v682
        %v691 = vadd.f32 %v636, %v683
        %v692 = vadd.f32 %v637, %v684
        %v693 = vadd.f32 %v638, %v685
        %v694 = vadd.f32 %v639, %v686
        %695 = vset.pattern.permute.xlu0 1
        %696 = vperm.xlu0 %695, %v234
        %v697 = vpop.permute.xlu0 %696
        %699 = vset.pattern.permute.xlu0 1
        %700 = vperm.xlu0 %699, %v236
        %v701 = vpop.permute.xlu0 %700
        %703 = vset.pattern.permute.xlu0 1
        %704 = vperm.xlu0 %703, %v238
        %v705 = vpop.permute.xlu0 %704
        %707 = vset.pattern.permute.xlu0 1
        %708 = vperm.xlu0 %707, %v240
        %v709 = vpop.permute.xlu0 %708
        %711 = vset.pattern.permute.xlu0 1
        %712 = vperm.xlu0 %711, %v242
        %v713 = vpop.permute.xlu0 %712
        %715 = vset.pattern.permute.xlu0 1
        %716 = vperm.xlu0 %715, %v244
        %v717 = vpop.permute.xlu0 %716
        %719 = vset.pattern.permute.xlu0 1
        %720 = vperm.xlu0 %719, %v246
        %v721 = vpop.permute.xlu0 %720
        %v723 = vlaneseq
        %v724 = vshrl.u32 %v723, 7
        %v725 = vsub.s32 5, %v724
        %v726 = vrot.slane %v419, %v725
        %v727 = vmul.f32 %v486, %v726
        %v728 = vmul.f32 %v697, %v726
        %v729 = vmul.f32 %v701, %v726
        %v730 = vmul.f32 %v705, %v726
        %v731 = vmul.f32 %v709, %v726
        %v732 = vmul.f32 %v713, %v726
        %v733 = vmul.f32 %v717, %v726
        %v734 = vmul.f32 %v721, %v726
        %v735 = vadd.f32 %v687, %v727
        %v736 = vadd.f32 %v688, %v728
        %v737 = vadd.f32 %v689, %v729
        %v738 = vadd.f32 %v690, %v730
        %v739 = vadd.f32 %v691, %v731
        %v740 = vadd.f32 %v692, %v732
        %v741 = vadd.f32 %v693, %v733
        %v742 = vadd.f32 %v694, %v734
        %743 = vset.pattern.permute.xlu0 2
        %744 = vperm.xlu0 %743, %v234
        %v745 = vpop.permute.xlu0 %744
        %747 = vset.pattern.permute.xlu0 2
        %748 = vperm.xlu0 %747, %v236
        %v749 = vpop.permute.xlu0 %748
        %751 = vset.pattern.permute.xlu0 2
        %752 = vperm.xlu0 %751, %v238
        %v753 = vpop.permute.xlu0 %752
        %755 = vset.pattern.permute.xlu0 2
        %756 = vperm.xlu0 %755, %v240
        %v757 = vpop.permute.xlu0 %756
        %759 = vset.pattern.permute.xlu0 2
        %760 = vperm.xlu0 %759, %v242
        %v761 = vpop.permute.xlu0 %760
        %763 = vset.pattern.permute.xlu0 2
        %764 = vperm.xlu0 %763, %v244
        %v765 = vpop.permute.xlu0 %764
        %767 = vset.pattern.permute.xlu0 2
        %768 = vperm.xlu0 %767, %v246
        %v769 = vpop.permute.xlu0 %768
        %v771 = vlaneseq
        %v772 = vshrl.u32 %v771, 7
        %v773 = vsub.s32 6, %v772
        %v774 = vrot.slane %v419, %v773
        %v775 = vmul.f32 %v538, %v774
        %v776 = vmul.f32 %v745, %v774
        %v777 = vmul.f32 %v749, %v774
        %v778 = vmul.f32 %v753, %v774
        %v779 = vmul.f32 %v757, %v774
        %v780 = vmul.f32 %v761, %v774
        %v781 = vmul.f32 %v765, %v774
        %v782 = vmul.f32 %v769, %v774
        %v783 = vadd.f32 %v735, %v775
        %v784 = vadd.f32 %v736, %v776
        %v785 = vadd.f32 %v737, %v777
        %v786 = vadd.f32 %v738, %v778
        %v787 = vadd.f32 %v739, %v779
        %v788 = vadd.f32 %v740, %v780
        %v789 = vadd.f32 %v741, %v781
        %v790 = vadd.f32 %v742, %v782
        %791 = vset.pattern.permute.xlu0 3
        %792 = vperm.xlu0 %791, %v234
        %v793 = vpop.permute.xlu0 %792
        %795 = vset.pattern.permute.xlu0 3
        %796 = vperm.xlu0 %795, %v236
        %v797 = vpop.permute.xlu0 %796
        %799 = vset.pattern.permute.xlu0 3
        %800 = vperm.xlu0 %799, %v238
        %v801 = vpop.permute.xlu0 %800
        %803 = vset.pattern.permute.xlu0 3
        %804 = vperm.xlu0 %803, %v240
        %v805 = vpop.permute.xlu0 %804
        %807 = vset.pattern.permute.xlu0 3
        %808 = vperm.xlu0 %807, %v242
        %v809 = vpop.permute.xlu0 %808
        %811 = vset.pattern.permute.xlu0 3
        %812 = vperm.xlu0 %811, %v244
        %v813 = vpop.permute.xlu0 %812
        %815 = vset.pattern.permute.xlu0 3
        %816 = vperm.xlu0 %815, %v246
        %v817 = vpop.permute.xlu0 %816
        %v819 = vlaneseq
        %v820 = vshrl.u32 %v819, 7
        %v821 = vsub.s32 7, %v820
        %v822 = vrot.slane %v419, %v821
        %v823 = vmul.f32 %v590, %v822
        %v824 = vmul.f32 %v793, %v822
        %v825 = vmul.f32 %v797, %v822
        %v826 = vmul.f32 %v801, %v822
        %v827 = vmul.f32 %v805, %v822
        %v828 = vmul.f32 %v809, %v822
        %v829 = vmul.f32 %v813, %v822
        %v830 = vmul.f32 %v817, %v822
        %v831 = vadd.f32 %v783, %v823
        %v832 = vadd.f32 %v784, %v824
        %v833 = vadd.f32 %v785, %v825
        %v834 = vadd.f32 %v786, %v826
        %v835 = vadd.f32 %v787, %v827
        %v836 = vadd.f32 %v788, %v828
        %v837 = vadd.f32 %v789, %v829
        %v838 = vadd.f32 %v790, %v830
        %840 = vset.pattern.permute.xlu0 0
        %841 = vperm.xlu0 %840, %v405
        %v842 = vpop.permute.xlu0 %841
        %845 = vset.pattern.permute.xlu0 0
        %846 = vperm.xlu0 %845, %v407
        %v847 = vpop.permute.xlu0 %846
        %850 = vset.pattern.permute.xlu0 0
        %851 = vperm.xlu0 %850, %v409
        %v852 = vpop.permute.xlu0 %851
        %855 = vset.pattern.permute.xlu0 0
        %856 = vperm.xlu0 %855, %v411
        %v857 = vpop.permute.xlu0 %856
        %860 = vset.pattern.permute.xlu0 0
        %861 = vperm.xlu0 %860, %v413
        %v862 = vpop.permute.xlu0 %861
        %865 = vset.pattern.permute.xlu0 0
        %866 = vperm.xlu0 %865, %v415
        %v867 = vpop.permute.xlu0 %866
        %870 = vset.pattern.permute.xlu0 0
        %871 = vperm.xlu0 %870, %v417
        %v872 = vpop.permute.xlu0 %871
        %v874 = vlaneseq
        %v875 = vshrl.u32 %v874, 7
        %v876 = vsub.s32 0, %v875
        %v877 = vrot.slane %v420, %v876
        %v878 = vmul.f32 %v427, %v877
        %v879 = vmul.f32 %v842, %v877
        %v880 = vmul.f32 %v847, %v877
        %v881 = vmul.f32 %v852, %v877
        %v882 = vmul.f32 %v857, %v877
        %v883 = vmul.f32 %v862, %v877
        %v884 = vmul.f32 %v867, %v877
        %v885 = vmul.f32 %v872, %v877
        %v886 = vadd.f32 %v831, %v878
        %v887 = vadd.f32 %v832, %v879
        %v888 = vadd.f32 %v833, %v880
        %v889 = vadd.f32 %v834, %v881
        %v890 = vadd.f32 %v835, %v882
        %v891 = vadd.f32 %v836, %v883
        %v892 = vadd.f32 %v837, %v884
        %v893 = vadd.f32 %v838, %v885
        %894 = vset.pattern.permute.xlu0 1
        %895 = vperm.xlu0 %894, %v405
        %v896 = vpop.permute.xlu0 %895
        %898 = vset.pattern.permute.xlu0 1
        %899 = vperm.xlu0 %898, %v407
        %v900 = vpop.permute.xlu0 %899
        %902 = vset.pattern.permute.xlu0 1
        %903 = vperm.xlu0 %902, %v409
        %v904 = vpop.permute.xlu0 %903
        %906 = vset.pattern.permute.xlu0 1
        %907 = vperm.xlu0 %906, %v411
        %v908 = vpop.permute.xlu0 %907
        %910 = vset.pattern.permute.xlu0 1
        %911 = vperm.xlu0 %910, %v413
        %v912 = vpop.permute.xlu0 %911
        %914 = vset.pattern.permute.xlu0 1
        %915 = vperm.xlu0 %914, %v415
        %v916 = vpop.permute.xlu0 %915
        %918 = vset.pattern.permute.xlu0 1
        %919 = vperm.xlu0 %918, %v417
        %v920 = vpop.permute.xlu0 %919
        %v922 = vlaneseq
        %v923 = vshrl.u32 %v922, 7
        %v924 = vsub.s32 1, %v923
        %v925 = vrot.slane %v420, %v924
        %v926 = vmul.f32 %v486, %v925
        %v927 = vmul.f32 %v896, %v925
        %v928 = vmul.f32 %v900, %v925
        %v929 = vmul.f32 %v904, %v925
        %v930 = vmul.f32 %v908, %v925
        %v931 = vmul.f32 %v912, %v925
        %v932 = vmul.f32 %v916, %v925
        %v933 = vmul.f32 %v920, %v925
        %v934 = vadd.f32 %v886, %v926
        %v935 = vadd.f32 %v887, %v927
        %v936 = vadd.f32 %v888, %v928
        %v937 = vadd.f32 %v889, %v929
        %v938 = vadd.f32 %v890, %v930
        %v939 = vadd.f32 %v891, %v931
        %v940 = vadd.f32 %v892, %v932
        %v941 = vadd.f32 %v893, %v933
        %942 = vset.pattern.permute.xlu0 2
        %943 = vperm.xlu0 %942, %v405
        %v944 = vpop.permute.xlu0 %943
        %946 = vset.pattern.permute.xlu0 2
        %947 = vperm.xlu0 %946, %v407
        %v948 = vpop.permute.xlu0 %947
        %950 = vset.pattern.permute.xlu0 2
        %951 = vperm.xlu0 %950, %v409
        %v952 = vpop.permute.xlu0 %951
        %954 = vset.pattern.permute.xlu0 2
        %955 = vperm.xlu0 %954, %v411
        %v956 = vpop.permute.xlu0 %955
        %958 = vset.pattern.permute.xlu0 2
        %959 = vperm.xlu0 %958, %v413
        %v960 = vpop.permute.xlu0 %959
        %962 = vset.pattern.permute.xlu0 2
        %963 = vperm.xlu0 %962, %v415
        %v964 = vpop.permute.xlu0 %963
        %966 = vset.pattern.permute.xlu0 2
        %967 = vperm.xlu0 %966, %v417
        %v968 = vpop.permute.xlu0 %967
        %v970 = vlaneseq
        %v971 = vshrl.u32 %v970, 7
        %v972 = vsub.s32 2, %v971
        %v973 = vrot.slane %v420, %v972
        %v974 = vmul.f32 %v538, %v973
        %v975 = vmul.f32 %v944, %v973
        %v976 = vmul.f32 %v948, %v973
        %v977 = vmul.f32 %v952, %v973
        %v978 = vmul.f32 %v956, %v973
        %v979 = vmul.f32 %v960, %v973
        %v980 = vmul.f32 %v964, %v973
        %v981 = vmul.f32 %v968, %v973
        %v982 = vadd.f32 %v934, %v974
        %v983 = vadd.f32 %v935, %v975
        %v984 = vadd.f32 %v936, %v976
        %v985 = vadd.f32 %v937, %v977
        %v986 = vadd.f32 %v938, %v978
        %v987 = vadd.f32 %v939, %v979
        %v988 = vadd.f32 %v940, %v980
        %v989 = vadd.f32 %v941, %v981
        %990 = vset.pattern.permute.xlu0 3
        %991 = vperm.xlu0 %990, %v405
        %v992 = vpop.permute.xlu0 %991
        %994 = vset.pattern.permute.xlu0 3
        %995 = vperm.xlu0 %994, %v407
        %v996 = vpop.permute.xlu0 %995
        %998 = vset.pattern.permute.xlu0 3
        %999 = vperm.xlu0 %998, %v409
        %v1000 = vpop.permute.xlu0 %999
        %1002 = vset.pattern.permute.xlu0 3
        %1003 = vperm.xlu0 %1002, %v411
        %v1004 = vpop.permute.xlu0 %1003
        %1006 = vset.pattern.permute.xlu0 3
        %1007 = vperm.xlu0 %1006, %v413
        %v1008 = vpop.permute.xlu0 %1007
        %1010 = vset.pattern.permute.xlu0 3
        %1011 = vperm.xlu0 %1010, %v415
        %v1012 = vpop.permute.xlu0 %1011
        %1014 = vset.pattern.permute.xlu0 3
        %1015 = vperm.xlu0 %1014, %v417
        %v1016 = vpop.permute.xlu0 %1015
        %v1018 = vlaneseq
        %v1019 = vshrl.u32 %v1018, 7
        %v1020 = vsub.s32 3, %v1019
        %v1021 = vrot.slane %v420, %v1020
        %v1022 = vmul.f32 %v590, %v1021
        %v1023 = vmul.f32 %v992, %v1021
        %v1024 = vmul.f32 %v996, %v1021
        %v1025 = vmul.f32 %v1000, %v1021
        %v1026 = vmul.f32 %v1004, %v1021
        %v1027 = vmul.f32 %v1008, %v1021
        %v1028 = vmul.f32 %v1012, %v1021
        %v1029 = vmul.f32 %v1016, %v1021
        %v1030 = vadd.f32 %v982, %v1022
        %v1031 = vadd.f32 %v983, %v1023
        %v1032 = vadd.f32 %v984, %v1024
        %v1033 = vadd.f32 %v985, %v1025
        %v1034 = vadd.f32 %v986, %v1026
        %v1035 = vadd.f32 %v987, %v1027
        %v1036 = vadd.f32 %v988, %v1028
        %v1037 = vadd.f32 %v989, %v1029
        %1039 = vset.pattern.permute.xlu0 0
        %1040 = vperm.xlu0 %1039, %v388
        %v1041 = vpop.permute.xlu0 %1040
        %1044 = vset.pattern.permute.xlu0 0
        %1045 = vperm.xlu0 %1044, %v390
        %v1046 = vpop.permute.xlu0 %1045
        %1049 = vset.pattern.permute.xlu0 0
        %1050 = vperm.xlu0 %1049, %v392
        %v1051 = vpop.permute.xlu0 %1050
        %1054 = vset.pattern.permute.xlu0 0
        %1055 = vperm.xlu0 %1054, %v394
        %v1056 = vpop.permute.xlu0 %1055
        %1059 = vset.pattern.permute.xlu0 0
        %1060 = vperm.xlu0 %1059, %v396
        %v1061 = vpop.permute.xlu0 %1060
        %1064 = vset.pattern.permute.xlu0 0
        %1065 = vperm.xlu0 %1064, %v398
        %v1066 = vpop.permute.xlu0 %1065
        %1069 = vset.pattern.permute.xlu0 0
        %1070 = vperm.xlu0 %1069, %v400
        %v1071 = vpop.permute.xlu0 %1070
        %1074 = vset.pattern.permute.xlu0 0
        %1075 = vperm.xlu0 %1074, %v402
        %v1076 = vpop.permute.xlu0 %1075
        %v1078 = vlaneseq
        %v1079 = vshrl.u32 %v1078, 7
        %v1080 = vsub.s32 4, %v1079
        %v1081 = vrot.slane %v420, %v1080
        %v1082 = vmul.f32 %v1041, %v1081
        %v1083 = vmul.f32 %v1046, %v1081
        %v1084 = vmul.f32 %v1051, %v1081
        %v1085 = vmul.f32 %v1056, %v1081
        %v1086 = vmul.f32 %v1061, %v1081
        %v1087 = vmul.f32 %v1066, %v1081
        %v1088 = vmul.f32 %v1071, %v1081
        %v1089 = vmul.f32 %v1076, %v1081
        %v1090 = vadd.f32 %v1030, %v1082
        %v1091 = vadd.f32 %v1031, %v1083
        %v1092 = vadd.f32 %v1032, %v1084
        %v1093 = vadd.f32 %v1033, %v1085
        %v1094 = vadd.f32 %v1034, %v1086
        %v1095 = vadd.f32 %v1035, %v1087
        %v1096 = vadd.f32 %v1036, %v1088
        %v1097 = vadd.f32 %v1037, %v1089
        %1098 = vset.pattern.permute.xlu0 1
        %1099 = vperm.xlu0 %1098, %v388
        %v1100 = vpop.permute.xlu0 %1099
        %1102 = vset.pattern.permute.xlu0 1
        %1103 = vperm.xlu0 %1102, %v390
        %v1104 = vpop.permute.xlu0 %1103
        %1106 = vset.pattern.permute.xlu0 1
        %1107 = vperm.xlu0 %1106, %v392
        %v1108 = vpop.permute.xlu0 %1107
        %1110 = vset.pattern.permute.xlu0 1
        %1111 = vperm.xlu0 %1110, %v394
        %v1112 = vpop.permute.xlu0 %1111
        %1114 = vset.pattern.permute.xlu0 1
        %1115 = vperm.xlu0 %1114, %v396
        %v1116 = vpop.permute.xlu0 %1115
        %1118 = vset.pattern.permute.xlu0 1
        %1119 = vperm.xlu0 %1118, %v398
        %v1120 = vpop.permute.xlu0 %1119
        %1122 = vset.pattern.permute.xlu0 1
        %1123 = vperm.xlu0 %1122, %v400
        %v1124 = vpop.permute.xlu0 %1123
        %1126 = vset.pattern.permute.xlu0 1
        %1127 = vperm.xlu0 %1126, %v402
        %v1128 = vpop.permute.xlu0 %1127
        %v1130 = vlaneseq
        %v1131 = vshrl.u32 %v1130, 7
        %v1132 = vsub.s32 5, %v1131
        %v1133 = vrot.slane %v420, %v1132
        %v1134 = vmul.f32 %v1100, %v1133
        %v1135 = vmul.f32 %v1104, %v1133
        %v1136 = vmul.f32 %v1108, %v1133
        %v1137 = vmul.f32 %v1112, %v1133
        %v1138 = vmul.f32 %v1116, %v1133
        %v1139 = vmul.f32 %v1120, %v1133
        %v1140 = vmul.f32 %v1124, %v1133
        %v1141 = vmul.f32 %v1128, %v1133
        %v1142 = vadd.f32 %v1090, %v1134
        %v1143 = vadd.f32 %v1091, %v1135
        %v1144 = vadd.f32 %v1092, %v1136
        %v1145 = vadd.f32 %v1093, %v1137
        %v1146 = vadd.f32 %v1094, %v1138
        %v1147 = vadd.f32 %v1095, %v1139
        %v1148 = vadd.f32 %v1096, %v1140
        %v1149 = vadd.f32 %v1097, %v1141
        %1150 = vset.pattern.permute.xlu0 2
        %1151 = vperm.xlu0 %1150, %v388
        %v1152 = vpop.permute.xlu0 %1151
        %1154 = vset.pattern.permute.xlu0 2
        %1155 = vperm.xlu0 %1154, %v390
        %v1156 = vpop.permute.xlu0 %1155
        %1158 = vset.pattern.permute.xlu0 2
        %1159 = vperm.xlu0 %1158, %v392
        %v1160 = vpop.permute.xlu0 %1159
        %1162 = vset.pattern.permute.xlu0 2
        %1163 = vperm.xlu0 %1162, %v394
        %v1164 = vpop.permute.xlu0 %1163
        %1166 = vset.pattern.permute.xlu0 2
        %1167 = vperm.xlu0 %1166, %v396
        %v1168 = vpop.permute.xlu0 %1167
        %1170 = vset.pattern.permute.xlu0 2
        %1171 = vperm.xlu0 %1170, %v398
        %v1172 = vpop.permute.xlu0 %1171
        %1174 = vset.pattern.permute.xlu0 2
        %1175 = vperm.xlu0 %1174, %v400
        %v1176 = vpop.permute.xlu0 %1175
        %1178 = vset.pattern.permute.xlu0 2
        %1179 = vperm.xlu0 %1178, %v402
        %v1180 = vpop.permute.xlu0 %1179
        %v1182 = vlaneseq
        %v1183 = vshrl.u32 %v1182, 7
        %v1184 = vsub.s32 6, %v1183
        %v1185 = vrot.slane %v420, %v1184
        %v1186 = vmul.f32 %v1152, %v1185
        %v1187 = vmul.f32 %v1156, %v1185
        %v1188 = vmul.f32 %v1160, %v1185
        %v1189 = vmul.f32 %v1164, %v1185
        %v1190 = vmul.f32 %v1168, %v1185
        %v1191 = vmul.f32 %v1172, %v1185
        %v1192 = vmul.f32 %v1176, %v1185
        %v1193 = vmul.f32 %v1180, %v1185
        %v1194 = vadd.f32 %v1142, %v1186
        %v1195 = vadd.f32 %v1143, %v1187
        %v1196 = vadd.f32 %v1144, %v1188
        %v1197 = vadd.f32 %v1145, %v1189
        %v1198 = vadd.f32 %v1146, %v1190
        %v1199 = vadd.f32 %v1147, %v1191
        %v1200 = vadd.f32 %v1148, %v1192
        %v1201 = vadd.f32 %v1149, %v1193
        %1202 = vset.pattern.permute.xlu0 3
        %1203 = vperm.xlu0 %1202, %v388
        %v1204 = vpop.permute.xlu0 %1203
        %1206 = vset.pattern.permute.xlu0 3
        %1207 = vperm.xlu0 %1206, %v390
        %v1208 = vpop.permute.xlu0 %1207
        %1210 = vset.pattern.permute.xlu0 3
        %1211 = vperm.xlu0 %1210, %v392
        %v1212 = vpop.permute.xlu0 %1211
        %1214 = vset.pattern.permute.xlu0 3
        %1215 = vperm.xlu0 %1214, %v394
        %v1216 = vpop.permute.xlu0 %1215
        %1218 = vset.pattern.permute.xlu0 3
        %1219 = vperm.xlu0 %1218, %v396
        %v1220 = vpop.permute.xlu0 %1219
        %1222 = vset.pattern.permute.xlu0 3
        %1223 = vperm.xlu0 %1222, %v398
        %v1224 = vpop.permute.xlu0 %1223
        %1226 = vset.pattern.permute.xlu0 3
        %1227 = vperm.xlu0 %1226, %v400
        %v1228 = vpop.permute.xlu0 %1227
        %1230 = vset.pattern.permute.xlu0 3
        %1231 = vperm.xlu0 %1230, %v402
        %v1232 = vpop.permute.xlu0 %1231
        %v1234 = vlaneseq
        %v1235 = vshrl.u32 %v1234, 7
        %v1236 = vsub.s32 7, %v1235
        %v1237 = vrot.slane %v420, %v1236
        %v1238 = vmul.f32 %v1204, %v1237
        %v1239 = vmul.f32 %v1208, %v1237
        %v1240 = vmul.f32 %v1212, %v1237
        %v1241 = vmul.f32 %v1216, %v1237
        %v1242 = vmul.f32 %v1220, %v1237
        %v1243 = vmul.f32 %v1224, %v1237
        %v1244 = vmul.f32 %v1228, %v1237
        %v1245 = vmul.f32 %v1232, %v1237
        %v1246 = vadd.f32 %v1194, %v1238
        %v1247 = vadd.f32 %v1195, %v1239
        %v1248 = vadd.f32 %v1196, %v1240
        %v1249 = vadd.f32 %v1197, %v1241
        %v1250 = vadd.f32 %v1198, %v1242
        %v1251 = vadd.f32 %v1199, %v1243
        %v1252 = vadd.f32 %v1200, %v1244
        %v1253 = vadd.f32 %v1201, %v1245
        %1255 = vset.pattern.permute.xlu0 0
        %1256 = vperm.xlu0 %1255, %v233
        %v1257 = vpop.permute.xlu0 %1256
        %1260 = vset.pattern.permute.xlu0 0
        %1261 = vperm.xlu0 %1260, %v235
        %v1262 = vpop.permute.xlu0 %1261
        %1265 = vset.pattern.permute.xlu0 0
        %1266 = vperm.xlu0 %1265, %v237
        %v1267 = vpop.permute.xlu0 %1266
        %1270 = vset.pattern.permute.xlu0 0
        %1271 = vperm.xlu0 %1270, %v239
        %v1272 = vpop.permute.xlu0 %1271
        %1275 = vset.pattern.permute.xlu0 0
        %1276 = vperm.xlu0 %1275, %v241
        %v1277 = vpop.permute.xlu0 %1276
        %1280 = vset.pattern.permute.xlu0 0
        %1281 = vperm.xlu0 %1280, %v243
        %v1282 = vpop.permute.xlu0 %1281
        %1285 = vset.pattern.permute.xlu0 0
        %1286 = vperm.xlu0 %1285, %v245
        %v1287 = vpop.permute.xlu0 %1286
        %1290 = vset.pattern.permute.xlu0 0
        %1291 = vperm.xlu0 %1290, %v247
        %v1292 = vpop.permute.xlu0 %1291
        %v1294 = vlaneseq
        %v1295 = vshrl.u32 %v1294, 7
        %v1296 = vsub.s32 0, %v1295
        %v1297 = vrot.slane %v421, %v1296
        %v1298 = vmul.f32 %v1257, %v1297
        %v1299 = vmul.f32 %v1262, %v1297
        %v1300 = vmul.f32 %v1267, %v1297
        %v1301 = vmul.f32 %v1272, %v1297
        %v1302 = vmul.f32 %v1277, %v1297
        %v1303 = vmul.f32 %v1282, %v1297
        %v1304 = vmul.f32 %v1287, %v1297
        %v1305 = vmul.f32 %v1292, %v1297
        %v1306 = vadd.f32 %v1246, %v1298
        %v1307 = vadd.f32 %v1247, %v1299
        %v1308 = vadd.f32 %v1248, %v1300
        %v1309 = vadd.f32 %v1249, %v1301
        %v1310 = vadd.f32 %v1250, %v1302
        %v1311 = vadd.f32 %v1251, %v1303
        %v1312 = vadd.f32 %v1252, %v1304
        %v1313 = vadd.f32 %v1253, %v1305
        %1314 = vset.pattern.permute.xlu0 1
        %1315 = vperm.xlu0 %1314, %v233
        %v1316 = vpop.permute.xlu0 %1315
        %1318 = vset.pattern.permute.xlu0 1
        %1319 = vperm.xlu0 %1318, %v235
        %v1320 = vpop.permute.xlu0 %1319
        %1322 = vset.pattern.permute.xlu0 1
        %1323 = vperm.xlu0 %1322, %v237
        %v1324 = vpop.permute.xlu0 %1323
        %1326 = vset.pattern.permute.xlu0 1
        %1327 = vperm.xlu0 %1326, %v239
        %v1328 = vpop.permute.xlu0 %1327
        %1330 = vset.pattern.permute.xlu0 1
        %1331 = vperm.xlu0 %1330, %v241
        %v1332 = vpop.permute.xlu0 %1331
        %1334 = vset.pattern.permute.xlu0 1
        %1335 = vperm.xlu0 %1334, %v243
        %v1336 = vpop.permute.xlu0 %1335
        %1338 = vset.pattern.permute.xlu0 1
        %1339 = vperm.xlu0 %1338, %v245
        %v1340 = vpop.permute.xlu0 %1339
        %1342 = vset.pattern.permute.xlu0 1
        %1343 = vperm.xlu0 %1342, %v247
        %v1344 = vpop.permute.xlu0 %1343
        %v1346 = vlaneseq
        %v1347 = vshrl.u32 %v1346, 7
        %v1348 = vsub.s32 1, %v1347
        %v1349 = vrot.slane %v421, %v1348
        %v1350 = vmul.f32 %v1316, %v1349
        %v1351 = vmul.f32 %v1320, %v1349
        %v1352 = vmul.f32 %v1324, %v1349
        %v1353 = vmul.f32 %v1328, %v1349
        %v1354 = vmul.f32 %v1332, %v1349
        %v1355 = vmul.f32 %v1336, %v1349
        %v1356 = vmul.f32 %v1340, %v1349
        %v1357 = vmul.f32 %v1344, %v1349
        %v1358 = vadd.f32 %v1306, %v1350
        %v1359 = vadd.f32 %v1307, %v1351
        %v1360 = vadd.f32 %v1308, %v1352
        %v1361 = vadd.f32 %v1309, %v1353
        %v1362 = vadd.f32 %v1310, %v1354
        %v1363 = vadd.f32 %v1311, %v1355
        %v1364 = vadd.f32 %v1312, %v1356
        %v1365 = vadd.f32 %v1313, %v1357
        %1366 = vset.pattern.permute.xlu0 2
        %1367 = vperm.xlu0 %1366, %v233
        %v1368 = vpop.permute.xlu0 %1367
        %1370 = vset.pattern.permute.xlu0 2
        %1371 = vperm.xlu0 %1370, %v235
        %v1372 = vpop.permute.xlu0 %1371
        %1374 = vset.pattern.permute.xlu0 2
        %1375 = vperm.xlu0 %1374, %v237
        %v1376 = vpop.permute.xlu0 %1375
        %1378 = vset.pattern.permute.xlu0 2
        %1379 = vperm.xlu0 %1378, %v239
        %v1380 = vpop.permute.xlu0 %1379
        %1382 = vset.pattern.permute.xlu0 2
        %1383 = vperm.xlu0 %1382, %v241
        %v1384 = vpop.permute.xlu0 %1383
        %1386 = vset.pattern.permute.xlu0 2
        %1387 = vperm.xlu0 %1386, %v243
        %v1388 = vpop.permute.xlu0 %1387
        %1390 = vset.pattern.permute.xlu0 2
        %1391 = vperm.xlu0 %1390, %v245
        %v1392 = vpop.permute.xlu0 %1391
        %1394 = vset.pattern.permute.xlu0 2
        %1395 = vperm.xlu0 %1394, %v247
        %v1396 = vpop.permute.xlu0 %1395
        %v1398 = vlaneseq
        %v1399 = vshrl.u32 %v1398, 7
        %v1400 = vsub.s32 2, %v1399
        %v1401 = vrot.slane %v421, %v1400
        %v1402 = vmul.f32 %v1368, %v1401
        %v1403 = vmul.f32 %v1372, %v1401
        %v1404 = vmul.f32 %v1376, %v1401
        %v1405 = vmul.f32 %v1380, %v1401
        %v1406 = vmul.f32 %v1384, %v1401
        %v1407 = vmul.f32 %v1388, %v1401
        %v1408 = vmul.f32 %v1392, %v1401
        %v1409 = vmul.f32 %v1396, %v1401
        %v1410 = vadd.f32 %v1358, %v1402
        %v1411 = vadd.f32 %v1359, %v1403
        %v1412 = vadd.f32 %v1360, %v1404
        %v1413 = vadd.f32 %v1361, %v1405
        %v1414 = vadd.f32 %v1362, %v1406
        %v1415 = vadd.f32 %v1363, %v1407
        %v1416 = vadd.f32 %v1364, %v1408
        %v1417 = vadd.f32 %v1365, %v1409
        %1418 = vset.pattern.permute.xlu0 3
        %1419 = vperm.xlu0 %1418, %v233
        %v1420 = vpop.permute.xlu0 %1419
        %1422 = vset.pattern.permute.xlu0 3
        %1423 = vperm.xlu0 %1422, %v235
        %v1424 = vpop.permute.xlu0 %1423
        %1426 = vset.pattern.permute.xlu0 3
        %1427 = vperm.xlu0 %1426, %v237
        %v1428 = vpop.permute.xlu0 %1427
        %1430 = vset.pattern.permute.xlu0 3
        %1431 = vperm.xlu0 %1430, %v239
        %v1432 = vpop.permute.xlu0 %1431
        %1434 = vset.pattern.permute.xlu0 3
        %1435 = vperm.xlu0 %1434, %v241
        %v1436 = vpop.permute.xlu0 %1435
        %1438 = vset.pattern.permute.xlu0 3
        %1439 = vperm.xlu0 %1438, %v243
        %v1440 = vpop.permute.xlu0 %1439
        %1442 = vset.pattern.permute.xlu0 3
        %1443 = vperm.xlu0 %1442, %v245
        %v1444 = vpop.permute.xlu0 %1443
        %1446 = vset.pattern.permute.xlu0 3
        %1447 = vperm.xlu0 %1446, %v247
        %v1448 = vpop.permute.xlu0 %1447
        %v1450 = vlaneseq
        %v1451 = vshrl.u32 %v1450, 7
        %v1452 = vsub.s32 3, %v1451
        %v1453 = vrot.slane %v421, %v1452
        %v1454 = vmul.f32 %v1420, %v1453
        %v1455 = vmul.f32 %v1424, %v1453
        %v1456 = vmul.f32 %v1428, %v1453
        %v1457 = vmul.f32 %v1432, %v1453
        %v1458 = vmul.f32 %v1436, %v1453
        %v1459 = vmul.f32 %v1440, %v1453
        %v1460 = vmul.f32 %v1444, %v1453
        %v1461 = vmul.f32 %v1448, %v1453
        %v1462 = vadd.f32 %v1410, %v1454
        %v1463 = vadd.f32 %v1411, %v1455
        %v1464 = vadd.f32 %v1412, %v1456
        %v1465 = vadd.f32 %v1413, %v1457
        %v1466 = vadd.f32 %v1414, %v1458
        %v1467 = vadd.f32 %v1415, %v1459
        %v1468 = vadd.f32 %v1416, %v1460
        %v1469 = vadd.f32 %v1417, %v1461
        %1471 = vset.pattern.permute.xlu0 0
        %1472 = vperm.xlu0 %1471, %v404
        %v1473 = vpop.permute.xlu0 %1472
        %1476 = vset.pattern.permute.xlu0 0
        %1477 = vperm.xlu0 %1476, %v406
        %v1478 = vpop.permute.xlu0 %1477
        %1481 = vset.pattern.permute.xlu0 0
        %1482 = vperm.xlu0 %1481, %v408
        %v1483 = vpop.permute.xlu0 %1482
        %1486 = vset.pattern.permute.xlu0 0
        %1487 = vperm.xlu0 %1486, %v410
        %v1488 = vpop.permute.xlu0 %1487
        %1491 = vset.pattern.permute.xlu0 0
        %1492 = vperm.xlu0 %1491, %v412
        %v1493 = vpop.permute.xlu0 %1492
        %1496 = vset.pattern.permute.xlu0 0
        %1497 = vperm.xlu0 %1496, %v414
        %v1498 = vpop.permute.xlu0 %1497
        %1501 = vset.pattern.permute.xlu0 0
        %1502 = vperm.xlu0 %1501, %v416
        %v1503 = vpop.permute.xlu0 %1502
        %1506 = vset.pattern.permute.xlu0 0
        %1507 = vperm.xlu0 %1506, %v418
        %v1508 = vpop.permute.xlu0 %1507
        %v1510 = vlaneseq
        %v1511 = vshrl.u32 %v1510, 7
        %v1512 = vsub.s32 4, %v1511
        %v1513 = vrot.slane %v421, %v1512
        %v1514 = vmul.f32 %v1473, %v1513
        %v1515 = vmul.f32 %v1478, %v1513
        %v1516 = vmul.f32 %v1483, %v1513
        %v1517 = vmul.f32 %v1488, %v1513
        %v1518 = vmul.f32 %v1493, %v1513
        %v1519 = vmul.f32 %v1498, %v1513
        %v1520 = vmul.f32 %v1503, %v1513
        %v1521 = vmul.f32 %v1508, %v1513
        %v1522 = vadd.f32 %v1462, %v1514
        %v1523 = vadd.f32 %v1463, %v1515
        %v1524 = vadd.f32 %v1464, %v1516
        %v1525 = vadd.f32 %v1465, %v1517
        %v1526 = vadd.f32 %v1466, %v1518
        %v1527 = vadd.f32 %v1467, %v1519
        %v1528 = vadd.f32 %v1468, %v1520
        %v1529 = vadd.f32 %v1469, %v1521
        %1530 = vset.pattern.permute.xlu0 1
        %1531 = vperm.xlu0 %1530, %v404
        %v1532 = vpop.permute.xlu0 %1531
        %1534 = vset.pattern.permute.xlu0 1
        %1535 = vperm.xlu0 %1534, %v406
        %v1536 = vpop.permute.xlu0 %1535
        %1538 = vset.pattern.permute.xlu0 1
        %1539 = vperm.xlu0 %1538, %v408
        %v1540 = vpop.permute.xlu0 %1539
        %1542 = vset.pattern.permute.xlu0 1
        %1543 = vperm.xlu0 %1542, %v410
        %v1544 = vpop.permute.xlu0 %1543
        %1546 = vset.pattern.permute.xlu0 1
        %1547 = vperm.xlu0 %1546, %v412
        %v1548 = vpop.permute.xlu0 %1547
        %1550 = vset.pattern.permute.xlu0 1
        %1551 = vperm.xlu0 %1550, %v414
        %v1552 = vpop.permute.xlu0 %1551
        %1554 = vset.pattern.permute.xlu0 1
        %1555 = vperm.xlu0 %1554, %v416
        %v1556 = vpop.permute.xlu0 %1555
        %1558 = vset.pattern.permute.xlu0 1
        %1559 = vperm.xlu0 %1558, %v418
        %v1560 = vpop.permute.xlu0 %1559
        %v1562 = vlaneseq
        %v1563 = vshrl.u32 %v1562, 7
        %v1564 = vsub.s32 5, %v1563
        %v1565 = vrot.slane %v421, %v1564
        %v1566 = vmul.f32 %v1532, %v1565
        %v1567 = vmul.f32 %v1536, %v1565
        %v1568 = vmul.f32 %v1540, %v1565
        %v1569 = vmul.f32 %v1544, %v1565
        %v1570 = vmul.f32 %v1548, %v1565
        %v1571 = vmul.f32 %v1552, %v1565
        %v1572 = vmul.f32 %v1556, %v1565
        %v1573 = vmul.f32 %v1560, %v1565
        %v1574 = vadd.f32 %v1522, %v1566
        %v1575 = vadd.f32 %v1523, %v1567
        %v1576 = vadd.f32 %v1524, %v1568
        %v1577 = vadd.f32 %v1525, %v1569
        %v1578 = vadd.f32 %v1526, %v1570
        %v1579 = vadd.f32 %v1527, %v1571
        %v1580 = vadd.f32 %v1528, %v1572
        %v1581 = vadd.f32 %v1529, %v1573
        %1582 = vset.pattern.permute.xlu0 2
        %1583 = vperm.xlu0 %1582, %v404
        %v1584 = vpop.permute.xlu0 %1583
        %1586 = vset.pattern.permute.xlu0 2
        %1587 = vperm.xlu0 %1586, %v406
        %v1588 = vpop.permute.xlu0 %1587
        %1590 = vset.pattern.permute.xlu0 2
        %1591 = vperm.xlu0 %1590, %v408
        %v1592 = vpop.permute.xlu0 %1591
        %1594 = vset.pattern.permute.xlu0 2
        %1595 = vperm.xlu0 %1594, %v410
        %v1596 = vpop.permute.xlu0 %1595
        %1598 = vset.pattern.permute.xlu0 2
        %1599 = vperm.xlu0 %1598, %v412
        %v1600 = vpop.permute.xlu0 %1599
        %1602 = vset.pattern.permute.xlu0 2
        %1603 = vperm.xlu0 %1602, %v414
        %v1604 = vpop.permute.xlu0 %1603
        %1606 = vset.pattern.permute.xlu0 2
        %1607 = vperm.xlu0 %1606, %v416
        %v1608 = vpop.permute.xlu0 %1607
        %1610 = vset.pattern.permute.xlu0 2
        %1611 = vperm.xlu0 %1610, %v418
        %v1612 = vpop.permute.xlu0 %1611
        %v1614 = vlaneseq
        %v1615 = vshrl.u32 %v1614, 7
        %v1616 = vsub.s32 6, %v1615
        %v1617 = vrot.slane %v421, %v1616
        %v1618 = vmul.f32 %v1584, %v1617
        %v1619 = vmul.f32 %v1588, %v1617
        %v1620 = vmul.f32 %v1592, %v1617
        %v1621 = vmul.f32 %v1596, %v1617
        %v1622 = vmul.f32 %v1600, %v1617
        %v1623 = vmul.f32 %v1604, %v1617
        %v1624 = vmul.f32 %v1608, %v1617
        %v1625 = vmul.f32 %v1612, %v1617
        %v1626 = vadd.f32 %v1574, %v1618
        %v1627 = vadd.f32 %v1575, %v1619
        %v1628 = vadd.f32 %v1576, %v1620
        %v1629 = vadd.f32 %v1577, %v1621
        %v1630 = vadd.f32 %v1578, %v1622
        %v1631 = vadd.f32 %v1579, %v1623
        %v1632 = vadd.f32 %v1580, %v1624
        %v1633 = vadd.f32 %v1581, %v1625
        %1634 = vset.pattern.permute.xlu0 3
        %1635 = vperm.xlu0 %1634, %v404
        %v1636 = vpop.permute.xlu0 %1635
        %1638 = vset.pattern.permute.xlu0 3
        %1639 = vperm.xlu0 %1638, %v406
        %v1640 = vpop.permute.xlu0 %1639
        %1642 = vset.pattern.permute.xlu0 3
        %1643 = vperm.xlu0 %1642, %v408
        %v1644 = vpop.permute.xlu0 %1643
        %1646 = vset.pattern.permute.xlu0 3
        %1647 = vperm.xlu0 %1646, %v410
        %v1648 = vpop.permute.xlu0 %1647
        %1650 = vset.pattern.permute.xlu0 3
        %1651 = vperm.xlu0 %1650, %v412
        %v1652 = vpop.permute.xlu0 %1651
        %1654 = vset.pattern.permute.xlu0 3
        %1655 = vperm.xlu0 %1654, %v414
        %v1656 = vpop.permute.xlu0 %1655
        %1658 = vset.pattern.permute.xlu0 3
        %1659 = vperm.xlu0 %1658, %v416
        %v1660 = vpop.permute.xlu0 %1659
        %1662 = vset.pattern.permute.xlu0 3
        %1663 = vperm.xlu0 %1662, %v418
        %v1664 = vpop.permute.xlu0 %1663
        %v1666 = vlaneseq
        %v1667 = vshrl.u32 %v1666, 7
        %v1668 = vsub.s32 7, %v1667
        %v1669 = vrot.slane %v421, %v1668
        %v1670 = vmul.f32 %v1636, %v1669
        %v1671 = vmul.f32 %v1640, %v1669
        %v1672 = vmul.f32 %v1644, %v1669
        %v1673 = vmul.f32 %v1648, %v1669
        %v1674 = vmul.f32 %v1652, %v1669
        %v1675 = vmul.f32 %v1656, %v1669
        %v1676 = vmul.f32 %v1660, %v1669
        %v1677 = vmul.f32 %v1664, %v1669
        %v1678 = vadd.f32 %v1626, %v1670
        %v1679 = vadd.f32 %v1627, %v1671
        %v1680 = vadd.f32 %v1628, %v1672
        %v1681 = vadd.f32 %v1629, %v1673
        %v1682 = vadd.f32 %v1630, %v1674
        %v1683 = vadd.f32 %v1631, %v1675
        %v1684 = vadd.f32 %v1632, %v1676
        %v1685 = vadd.f32 %v1633, %v1677
        %v1686 = vlaneseq
        %v1687 = vshrl.u32 %v1686, 7
        %v1688 = vsub.s32 0, %v1687
        %v1689 = vrot.slane %v422, %v1688
        %v1690 = vmul.f32 %v432, %v1689
        %v1691 = vmul.f32 %v437, %v1689
        %v1692 = vmul.f32 %v442, %v1689
        %v1693 = vmul.f32 %v447, %v1689
        %v1694 = vmul.f32 %v452, %v1689
        %v1695 = vmul.f32 %v457, %v1689
        %v1696 = vmul.f32 %v462, %v1689
        %v1697 = vmul.f32 %v427, %v1689
        %v1698 = vadd.f32 %v1678, %v1690
        %v1699 = vadd.f32 %v1679, %v1691
        %v1700 = vadd.f32 %v1680, %v1692
        %v1701 = vadd.f32 %v1681, %v1693
        %v1702 = vadd.f32 %v1682, %v1694
        %v1703 = vadd.f32 %v1683, %v1695
        %v1704 = vadd.f32 %v1684, %v1696
        %v1705 = vadd.f32 %v1685, %v1697
        %v1706 = vlaneseq
        %v1707 = vshrl.u32 %v1706, 7
        %v1708 = vsub.s32 1, %v1707
        %v1709 = vrot.slane %v422, %v1708
        %v1710 = vmul.f32 %v490, %v1709
        %v1711 = vmul.f32 %v494, %v1709
        %v1712 = vmul.f32 %v498, %v1709
        %v1713 = vmul.f32 %v502, %v1709
        %v1714 = vmul.f32 %v506, %v1709
        %v1715 = vmul.f32 %v510, %v1709
        %v1716 = vmul.f32 %v514, %v1709
        %v1717 = vmul.f32 %v486, %v1709
        %v1718 = vadd.f32 %v1698, %v1710
        %v1719 = vadd.f32 %v1699, %v1711
        %v1720 = vadd.f32 %v1700, %v1712
        %v1721 = vadd.f32 %v1701, %v1713
        %v1722 = vadd.f32 %v1702, %v1714
        %v1723 = vadd.f32 %v1703, %v1715
        %v1724 = vadd.f32 %v1704, %v1716
        %v1725 = vadd.f32 %v1705, %v1717
        %v1726 = vlaneseq
        %v1727 = vshrl.u32 %v1726, 7
        %v1728 = vsub.s32 2, %v1727
        %v1729 = vrot.slane %v422, %v1728
        %v1730 = vmul.f32 %v542, %v1729
        %v1731 = vmul.f32 %v546, %v1729
        %v1732 = vmul.f32 %v550, %v1729
        %v1733 = vmul.f32 %v554, %v1729
        %v1734 = vmul.f32 %v558, %v1729
        %v1735 = vmul.f32 %v562, %v1729
        %v1736 = vmul.f32 %v566, %v1729
        %v1737 = vmul.f32 %v538, %v1729
        %v1738 = vadd.f32 %v1718, %v1730
        %v1739 = vadd.f32 %v1719, %v1731
        %v1740 = vadd.f32 %v1720, %v1732
        %v1741 = vadd.f32 %v1721, %v1733
        %v1742 = vadd.f32 %v1722, %v1734
        %v1743 = vadd.f32 %v1723, %v1735
        %v1744 = vadd.f32 %v1724, %v1736
        %v1745 = vadd.f32 %v1725, %v1737
        %v1746 = vlaneseq
        %v1747 = vshrl.u32 %v1746, 7
        %v1748 = vsub.s32 3, %v1747
        %v1749 = vrot.slane %v422, %v1748
        %v1750 = vmul.f32 %v594, %v1749
        %v1751 = vmul.f32 %v598, %v1749
        %v1752 = vmul.f32 %v602, %v1749
        %v1753 = vmul.f32 %v606, %v1749
        %v1754 = vmul.f32 %v610, %v1749
        %v1755 = vmul.f32 %v614, %v1749
        %v1756 = vmul.f32 %v618, %v1749
        %v1757 = vmul.f32 %v590, %v1749
        %v1758 = vadd.f32 %v1738, %v1750
        %v1759 = vadd.f32 %v1739, %v1751
        %v1760 = vadd.f32 %v1740, %v1752
        %v1761 = vadd.f32 %v1741, %v1753
        %v1762 = vadd.f32 %v1742, %v1754
        %v1763 = vadd.f32 %v1743, %v1755
        %v1764 = vadd.f32 %v1744, %v1756
        %v1765 = vadd.f32 %v1745, %v1757
        %v1766 = vlaneseq
        %v1767 = vshrl.u32 %v1766, 7
        %v1768 = vsub.s32 4, %v1767
        %v1769 = vrot.slane %v422, %v1768
        %v1770 = vmul.f32 %v643, %v1769
        %v1771 = vmul.f32 %v648, %v1769
        %v1772 = vmul.f32 %v653, %v1769
        %v1773 = vmul.f32 %v658, %v1769
        %v1774 = vmul.f32 %v663, %v1769
        %v1775 = vmul.f32 %v668, %v1769
        %v1776 = vmul.f32 %v673, %v1769
        %v1777 = vmul.f32 %v427, %v1769
        %v1778 = vadd.f32 %v1758, %v1770
        %v1779 = vadd.f32 %v1759, %v1771
        %v1780 = vadd.f32 %v1760, %v1772
        %v1781 = vadd.f32 %v1761, %v1773
        %v1782 = vadd.f32 %v1762, %v1774
        %v1783 = vadd.f32 %v1763, %v1775
        %v1784 = vadd.f32 %v1764, %v1776
        %v1785 = vadd.f32 %v1765, %v1777
        %v1786 = vlaneseq
        %v1787 = vshrl.u32 %v1786, 7
        %v1788 = vsub.s32 5, %v1787
        %v1789 = vrot.slane %v422, %v1788
        %v1790 = vmul.f32 %v697, %v1789
        %v1791 = vmul.f32 %v701, %v1789
        %v1792 = vmul.f32 %v705, %v1789
        %v1793 = vmul.f32 %v709, %v1789
        %v1794 = vmul.f32 %v713, %v1789
        %v1795 = vmul.f32 %v717, %v1789
        %v1796 = vmul.f32 %v721, %v1789
        %v1797 = vmul.f32 %v486, %v1789
        %v1798 = vadd.f32 %v1778, %v1790
        %v1799 = vadd.f32 %v1779, %v1791
        %v1800 = vadd.f32 %v1780, %v1792
        %v1801 = vadd.f32 %v1781, %v1793
        %v1802 = vadd.f32 %v1782, %v1794
        %v1803 = vadd.f32 %v1783, %v1795
        %v1804 = vadd.f32 %v1784, %v1796
        %v1805 = vadd.f32 %v1785, %v1797
        %v1806 = vlaneseq
        %v1807 = vshrl.u32 %v1806, 7
        %v1808 = vsub.s32 6, %v1807
        %v1809 = vrot.slane %v422, %v1808
        %v1810 = vmul.f32 %v745, %v1809
        %v1811 = vmul.f32 %v749, %v1809
        %v1812 = vmul.f32 %v753, %v1809
        %v1813 = vmul.f32 %v757, %v1809
        %v1814 = vmul.f32 %v761, %v1809
        %v1815 = vmul.f32 %v765, %v1809
        %v1816 = vmul.f32 %v769, %v1809
        %v1817 = vmul.f32 %v538, %v1809
        %v1818 = vadd.f32 %v1798, %v1810
        %v1819 = vadd.f32 %v1799, %v1811
        %v1820 = vadd.f32 %v1800, %v1812
        %v1821 = vadd.f32 %v1801, %v1813
        %v1822 = vadd.f32 %v1802, %v1814
        %v1823 = vadd.f32 %v1803, %v1815
        %v1824 = vadd.f32 %v1804, %v1816
        %v1825 = vadd.f32 %v1805, %v1817
        %v1826 = vlaneseq
        %v1827 = vshrl.u32 %v1826, 7
        %v1828 = vsub.s32 7, %v1827
        %v1829 = vrot.slane %v422, %v1828
        %v1830 = vmul.f32 %v793, %v1829
        %v1831 = vmul.f32 %v797, %v1829
        %v1832 = vmul.f32 %v801, %v1829
        %v1833 = vmul.f32 %v805, %v1829
        %v1834 = vmul.f32 %v809, %v1829
        %v1835 = vmul.f32 %v813, %v1829
        %v1836 = vmul.f32 %v817, %v1829
        %v1837 = vmul.f32 %v590, %v1829
        %v1838 = vadd.f32 %v1818, %v1830
        %v1839 = vadd.f32 %v1819, %v1831
        %v1840 = vadd.f32 %v1820, %v1832
        %v1841 = vadd.f32 %v1821, %v1833
        %v1842 = vadd.f32 %v1822, %v1834
        %v1843 = vadd.f32 %v1823, %v1835
        %v1844 = vadd.f32 %v1824, %v1836
        %v1845 = vadd.f32 %v1825, %v1837
        %v1846 = vlaneseq
        %v1847 = vshrl.u32 %v1846, 7
        %v1848 = vsub.s32 0, %v1847
        %v1849 = vrot.slane %v423, %v1848
        %v1850 = vmul.f32 %v842, %v1849
        %v1851 = vmul.f32 %v847, %v1849
        %v1852 = vmul.f32 %v852, %v1849
        %v1853 = vmul.f32 %v857, %v1849
        %v1854 = vmul.f32 %v862, %v1849
        %v1855 = vmul.f32 %v867, %v1849
        %v1856 = vmul.f32 %v872, %v1849
        %v1857 = vmul.f32 %v427, %v1849
        %v1858 = vadd.f32 %v1838, %v1850
        %v1859 = vadd.f32 %v1839, %v1851
        %v1860 = vadd.f32 %v1840, %v1852
        %v1861 = vadd.f32 %v1841, %v1853
        %v1862 = vadd.f32 %v1842, %v1854
        %v1863 = vadd.f32 %v1843, %v1855
        %v1864 = vadd.f32 %v1844, %v1856
        %v1865 = vadd.f32 %v1845, %v1857
        %v1866 = vlaneseq
        %v1867 = vshrl.u32 %v1866, 7
        %v1868 = vsub.s32 1, %v1867
        %v1869 = vrot.slane %v423, %v1868
        %v1870 = vmul.f32 %v896, %v1869
        %v1871 = vmul.f32 %v900, %v1869
        %v1872 = vmul.f32 %v904, %v1869
        %v1873 = vmul.f32 %v908, %v1869
        %v1874 = vmul.f32 %v912, %v1869
        %v1875 = vmul.f32 %v916, %v1869
        %v1876 = vmul.f32 %v920, %v1869
        %v1877 = vmul.f32 %v486, %v1869
        %v1878 = vadd.f32 %v1858, %v1870
        %v1879 = vadd.f32 %v1859, %v1871
        %v1880 = vadd.f32 %v1860, %v1872
        %v1881 = vadd.f32 %v1861, %v1873
        %v1882 = vadd.f32 %v1862, %v1874
        %v1883 = vadd.f32 %v1863, %v1875
        %v1884 = vadd.f32 %v1864, %v1876
        %v1885 = vadd.f32 %v1865, %v1877
        %v1886 = vlaneseq
        %v1887 = vshrl.u32 %v1886, 7
        %v1888 = vsub.s32 2, %v1887
        %v1889 = vrot.slane %v423, %v1888
        %v1890 = vmul.f32 %v944, %v1889
        %v1891 = vmul.f32 %v948, %v1889
        %v1892 = vmul.f32 %v952, %v1889
        %v1893 = vmul.f32 %v956, %v1889
        %v1894 = vmul.f32 %v960, %v1889
        %v1895 = vmul.f32 %v964, %v1889
        %v1896 = vmul.f32 %v968, %v1889
        %v1897 = vmul.f32 %v538, %v1889
        %v1898 = vadd.f32 %v1878, %v1890
        %v1899 = vadd.f32 %v1879, %v1891
        %v1900 = vadd.f32 %v1880, %v1892
        %v1901 = vadd.f32 %v1881, %v1893
        %v1902 = vadd.f32 %v1882, %v1894
        %v1903 = vadd.f32 %v1883, %v1895
        %v1904 = vadd.f32 %v1884, %v1896
        %v1905 = vadd.f32 %v1885, %v1897
        %v1906 = vlaneseq
        %v1907 = vshrl.u32 %v1906, 7
        %v1908 = vsub.s32 3, %v1907
        %v1909 = vrot.slane %v423, %v1908
        %v1910 = vmul.f32 %v992, %v1909
        %v1911 = vmul.f32 %v996, %v1909
        %v1912 = vmul.f32 %v1000, %v1909
        %v1913 = vmul.f32 %v1004, %v1909
        %v1914 = vmul.f32 %v1008, %v1909
        %v1915 = vmul.f32 %v1012, %v1909
        %v1916 = vmul.f32 %v1016, %v1909
        %v1917 = vmul.f32 %v590, %v1909
        %v1918 = vadd.f32 %v1898, %v1910
        %v1919 = vadd.f32 %v1899, %v1911
        %v1920 = vadd.f32 %v1900, %v1912
        %v1921 = vadd.f32 %v1901, %v1913
        %v1922 = vadd.f32 %v1902, %v1914
        %v1923 = vadd.f32 %v1903, %v1915
        %v1924 = vadd.f32 %v1904, %v1916
        %v1925 = vadd.f32 %v1905, %v1917
        %v1926 = vld [vmem:[%s2] sm:$0x1]
        %v1928 = vlaneseq
        %v1929 = vshrl.u32 %v1928, 7
        %v1930 = vsub.s32 0, %v1929
        %v1931 = vrot.slane %v1926, %v1930
        %v1933 = vadd.f32 %v1918, %v1931
        %v1934 = vadd.f32 %v1919, %v1931
        %v1935 = vadd.f32 %v1920, %v1931
        %v1936 = vadd.f32 %v1921, %v1931
        %v1937 = vadd.f32 %v1922, %v1931
        %v1938 = vadd.f32 %v1923, %v1931
        %v1939 = vadd.f32 %v1924, %v1931
        %v1940 = vadd.f32 %v1925, %v1931
        %v1941 = vxor.u32 %v1933, 2147483648
        %v1942 = vxor.u32 %v1934, 2147483648
        %v1943 = vxor.u32 %v1935, 2147483648
        %v1944 = vxor.u32 %v1936, 2147483648
        %v1945 = vxor.u32 %v1937, 2147483648
        %v1946 = vxor.u32 %v1938, 2147483648
        %v1947 = vxor.u32 %v1939, 2147483648
        %v1948 = vxor.u32 %v1940, 2147483648
        %v1949 = vmul.f32 %v1941, 1.442695
        %v1950 = vpow.pop %v1949
        %v1951 = vmul.f32 %v1942, 1.442695
        %v1952 = vpow.pop %v1951
        %v1953 = vmul.f32 %v1943, 1.442695
        %v1954 = vpow.pop %v1953
        %v1955 = vmul.f32 %v1944, 1.442695
        %v1956 = vpow.pop %v1955
        %v1957 = vmul.f32 %v1945, 1.442695
        %v1958 = vpow.pop %v1957
        %v1959 = vmul.f32 %v1946, 1.442695
        %v1960 = vpow.pop %v1959
        %v1961 = vmul.f32 %v1947, 1.442695
        %v1962 = vpow.pop %v1961
        %v1963 = vmul.f32 %v1948, 1.442695
        %v1964 = vpow.pop %v1963
        %v1965 = vadd.f32 %v1950, 1.0
        %v1966 = vadd.f32 %v1952, 1.0
        %v1967 = vadd.f32 %v1954, 1.0
        %v1968 = vadd.f32 %v1956, 1.0
        %v1969 = vadd.f32 %v1958, 1.0
        %v1970 = vadd.f32 %v1960, 1.0
        %v1971 = vadd.f32 %v1962, 1.0
        %v1972 = vadd.f32 %v1964, 1.0
        %v1973 = vrcp.pop %v1965
        %v1974 = vmul.f32 1.0, %v1973
        %v1975 = vrcp.pop %v1966
        %v1976 = vmul.f32 1.0, %v1975
        %v1977 = vrcp.pop %v1967
        %v1978 = vmul.f32 1.0, %v1977
        %v1979 = vrcp.pop %v1968
        %v1980 = vmul.f32 1.0, %v1979
        %v1981 = vrcp.pop %v1969
        %v1982 = vmul.f32 1.0, %v1981
        %v1983 = vrcp.pop %v1970
        %v1984 = vmul.f32 1.0, %v1983
        %v1985 = vrcp.pop %v1971
        %v1986 = vmul.f32 1.0, %v1985
        %v1987 = vrcp.pop %v1972
        %v1988 = vmul.f32 1.0, %v1987
        %v1989 = vmul.f32 %v1933, %v1974
        %v1990 = vmul.f32 %v1934, %v1976
        %v1991 = vmul.f32 %v1935, %v1978
        %v1992 = vmul.f32 %v1936, %v1980
        %v1993 = vmul.f32 %v1937, %v1982
        %v1994 = vmul.f32 %v1938, %v1984
        %v1995 = vmul.f32 %v1939, %v1986
        %v1996 = vmul.f32 %v1940, %v1988
        %vm1997 = vcmask 64512
        %1998 = vst.msk [vmem:[%s163] sm:$0xff] %vm1997, %v1989
        %1999 = vst.msk [vmem:[%s163 + $0x8] sm:$0xff] %vm1997, %v1990
        %2000 = vst.msk [vmem:[%s163 + $0x10] sm:$0xff] %vm1997, %v1991
        %2001 = vst.msk [vmem:[%s163 + $0x18] sm:$0xff] %vm1997, %v1992
        %2002 = vst.msk [vmem:[%s163 + $0x20] sm:$0xff] %vm1997, %v1993
        %2003 = vst.msk [vmem:[%s163 + $0x28] sm:$0xff] %vm1997, %v1994
        %2004 = vst.msk [vmem:[%s163 + $0x30] sm:$0xff] %vm1997, %v1995
        %2005 = vst.msk [vmem:[%s163 + $0x38] sm:$0xff] %vm1997, %v1996
        %s2006 = sand.u32 %s93, 1
        %s2007 = scalar_lea.sflag [#allocation3], %s2006
        %s2008 = sand.u32 %s93, 1
        %s2009 = smul.addr %s2008, 64
        %s2010 = scalar_lea.vmem [#allocation2], %s2009
        // Predicated region
        $region33: #{tpu_custom_call.1} parent=31 // pred_check
          %p2011 = pneg %p103
        $region34: #{tpu_custom_call.1} parent=31 // pred_check_branch
          %2013 = sbr.rel (%p2011) target = $region36
        $region35: #{tpu_custom_call.1} parent=31 // pred_region
          %s2015 = ssub.s32 1024, 1024
          %2016 = vsyncadd %s2007, %s2015
          %s2017 = smul.addr %s17, 8
          %s2018 = smul.addr %s2017, 128
          %s2019 = scalar_lea.hbm %s3, %s2018
          %s2020 = sshll.u32 %s2010, 4
          %s2021 = int_to_ptr.vmem [resolvable:$true] %s2020
          %2026 = dma.vmem_to_hbm [thread:$0]  %s2021, 1024, %s2019, %s2007, 128, 128, 8
        $region36: #{tpu_custom_call.1} parent=31 // pred_fallthru
          _
      $region32: #{tpu_custom_call.1} parent=5 // pred_fallthru
        _
      %p2027 = scmp.le.s32.totalorder 2, %s12
      // Predicated region
      $region37: #{tpu_custom_call.1} parent=5 // pred_check
        %p2028 = pneg %p2027
      $region38: #{tpu_custom_call.1} parent=5 // pred_check_branch
        %2030 = sbr.rel (%p2028) target = $region40
      $region39: #{tpu_custom_call.1} parent=5 // pred_region
        %s2031 = ssub.s32 %s12, 2
        // Predicated region
        $region41: #{tpu_custom_call.1} parent=39 // pred_check
          %p2032 = pneg %p109
        $region42: #{tpu_custom_call.1} parent=39 // pred_check_branch
          %2034 = sbr.rel (%p2032) target = $region44
        $region43: #{tpu_custom_call.1} parent=39 // pred_region
          %s2035 = sand.u32 %s94, 1
          %s2036 = scalar_lea.sflag [#allocation3], %s2035
          %s2037 = sand.u32 %s94, 1
          %s2038 = smul.addr %s2037, 64
          %s2039 = scalar_lea.vmem [#allocation2], %s2038
          %2040 = dma.done %s2036, 1024
        $region44: #{tpu_custom_call.1} parent=39 // pred_fallthru
          _
      $region40: #{tpu_custom_call.1} parent=5 // pred_fallthru
        _
    $region6: #{tpu_custom_call.1} parent=1 // loop_footer
      %s16 = sadd.s32 1, %s12
    $region7: #{tpu_custom_call.1} parent=1 // loop_footer_branch
      %11 = sbr.rel target = $region3
    $region8: #{tpu_custom_call.1} parent=1 // loop_exit
      _
    %2041 = vsyncpa [#allocation3], 1
    %s2042 = scalar_lea.sflag [#allocation3], 1
    %2043 = vsyncpa %s2042, 1

</llo_original>
